<compile_context>
chip_gen: v5e
topology: v5e:2x2
jax: 0.10.0
libtpu: 0.0.40
codegen_flags: <defaults>
</compile_context>

<pallas_src>
import functools

import jax
import jax.numpy as jnp
import numpy as np
from jax.experimental import pallas as pl
from jax.experimental.pallas import tpu as pltpu

N = 2
CIN, COUT, K, STRIDE, PAD = 2, 3, 3, 2, 1
HIN = WIN = 5
HOUT = (HIN - 1) * STRIDE - 2 * PAD + K          # = 9
LIN_IN, LIN_OUT = 9, 20
BN_EPS = 1e-5
_LANE = 128


def _round_up(x, m):
    return ((x + m - 1) // m) * m


def _fused_kernel(patches_ref, wT_ref, x1_ref, x1t_ref, par_ref, wblk_ref,
                  lb_ref, out_ref, *, n_valid, ncol_pad):
    """ConvTranspose2d + BatchNorm2d(train) + elementwise graph + Linear.

    All operands are lane-dense 2-D slabs (last dim a multiple of 128); the
    trailing `ncol_pad - n_valid` lanes of patches / x1 / x1t are zero pad.
    """
    par = par_ref[...]                                   # (COUT, 3)
    b_ct, gamma, beta = par[:, 0:1], par[:, 1:2], par[:, 2:3]

    # --- ConvTranspose2d: one MXU matmul on the im2col'd input --------------
    y1 = jnp.dot(wT_ref[...], patches_ref[...],
                 preferred_element_type=jnp.float32,
                 precision=jax.lax.Precision.HIGHEST) + b_ct      # (C, P)

    # --- BatchNorm2d with batch statistics (pad lanes masked out) -----------
    x1 = x1_ref[...]                                              # (C, P)
    lane = jax.lax.broadcasted_iota(jnp.int32, (1, ncol_pad), 1)
    valid = (lane < n_valid).astype(jnp.float32)
    inv_cnt = 1.0 / n_valid
    mean = jnp.sum(x1, axis=1, keepdims=True) * inv_cnt           # (C, 1)
    centered = (x1 - mean) * valid                                # exact 2-pass var
    var = jnp.sum(centered * centered, axis=1, keepdims=True) * inv_cnt
    scale = gamma * jax.lax.rsqrt(var + BN_EPS)
    shift = beta - mean * scale
    x1n = x1 * scale + shift                                      # BN(x1)
    # transpose(H,W) commutes with the per-channel affine: apply the same
    # affine to the pre-transposed copy -> no in-kernel transpose at all.
    y0 = x1t_ref[...] * scale + shift

    # --- elementwise graph ----------------------------------------------------
    # y2 = y1 + x1n ; y3 = -y1 ; y4 = y0 + y3 ; y6 = y4 + y0
    y5 = y0 + y1 + x1n                    # y0 + y2
    y7 = x1n + y0 + y0 - y1               # x1n + y6

    # --- Linear(9 -> 20) kept in slab layout via block-diagonal weight -------
    y8 = jnp.dot(y5, wblk_ref[...],
                 preferred_element_type=jnp.float32,
                 precision=jax.lax.Precision.HIGHEST) + lb_ref[...]   # (C, L)

    # --- single coalesced, lane-aligned output slab ---------------------------
    out_ref[:, 0:ncol_pad] = y5
    out_ref[:, ncol_pad:2 * ncol_pad] = y7
    out_ref[:, 2 * ncol_pad:] = y8


def model_forward(x0, x1, params):
    w_ct, b_ct = params["w_ct"], params["b_ct"]
    gamma, beta = params["gamma"], params["beta"]
    w_lin, b_lin = params["w_lin"], params["b_lin"]

    nb = x0.shape[0]
    ncol = nb * HOUT * HOUT                      # 162 (n, oh, ow) columns
    ncol_pad = _round_up(ncol, _LANE)            # 256
    lincol = nb * HOUT * LIN_OUT                 # 360
    lincol_pad = _round_up(lincol, _LANE)        # 384
    totcol = 2 * ncol_pad + lincol_pad           # 896

    # ---- wrapper-side layout glue (few small HLOs, fused by XLA) ------------
    pp = K - 1 - PAD
    # im2col of the zero-dilated + padded x0 in ONE HLO:
    # (N, CIN*K*K, 9, 9), feature order (ci, kh, kw) with ci slowest.
    patches = jax.lax.conv_general_dilated_patches(
        x0, filter_shape=(K, K), window_strides=(1, 1),
        padding=((pp, pp), (pp, pp)), lhs_dilation=(STRIDE, STRIDE))
    patches = jnp.transpose(patches, (1, 0, 2, 3)).reshape(CIN * K * K, ncol)
    patches = jnp.pad(patches, ((0, 0), (0, ncol_pad - ncol)))

    # Flipped, (out,in)-ordered conv-transpose weight as (COUT, CIN*K*K).
    wmatT = jnp.transpose(w_ct[:, :, ::-1, ::-1],
                          (1, 0, 2, 3)).reshape(COUT, CIN * K * K)

    # x1 and its HW-transpose in channel-major slabs, zero-padded lanes.
    x1_cm = jnp.pad(jnp.transpose(x1, (1, 0, 2, 3)).reshape(COUT, ncol),
                    ((0, 0), (0, ncol_pad - ncol)))
    x1t_cm = jnp.pad(jnp.transpose(x1, (1, 0, 3, 2)).reshape(COUT, ncol),
                     ((0, 0), (0, ncol_pad - ncol)))

    # Per-channel params in one tiny tile: columns = [b_ct, gamma, beta].
    chan_par = jnp.stack([b_ct, gamma, beta], axis=1)            # (COUT, 3)

    # Block-diagonal Linear weight: y5 slab (C, ncol_pad) @ w_blk -> (C, 384).
    # Pad rows (>=162) are zero so junk in y5's pad lanes never reaches y8.
    w_blk = jnp.kron(jnp.eye(nb * HOUT, dtype=jnp.float32), w_lin.T)
    w_blk = jnp.pad(w_blk, ((0, ncol_pad - ncol), (0, lincol_pad - lincol)))
    lin_b = jnp.pad(jnp.tile(b_lin, nb * HOUT),
                    (0, lincol_pad - lincol)).reshape(1, lincol_pad)

    vmem = pl.BlockSpec(memory_space=pltpu.MemorySpace.VMEM)
    kernel = functools.partial(_fused_kernel, n_valid=ncol, ncol_pad=ncol_pad)

    flops = (2 * COUT * (CIN * K * K) * ncol_pad          # conv matmul
             + 2 * COUT * ncol_pad * lincol_pad           # block-diag linear
             + 16 * COUT * ncol_pad)                      # BN + elementwise
    bytes_accessed = 4 * ((CIN * K * K) * ncol_pad + COUT * (CIN * K * K)
                          + 2 * COUT * ncol_pad + 3 * COUT
                          + ncol_pad * lincol_pad + lincol_pad
                          + COUT * totcol)

    out = pl.pallas_call(
        kernel,
        out_shape=jax.ShapeDtypeStruct((COUT, totcol), jnp.float32),
        in_specs=[vmem] * 7,
        out_specs=vmem,
        cost_estimate=pl.CostEstimate(flops=flops, transcendentals=COUT,
                                      bytes_accessed=bytes_accessed),
    )(patches, wmatT, x1_cm, x1t_cm, chan_par, w_blk, lin_b)

    # Slice the slab and restore NCHW outside the kernel.
    y5 = jnp.transpose(out[:, :ncol].reshape(COUT, nb, HOUT, HOUT),
                       (1, 0, 2, 3))
    y7 = jnp.transpose(
        out[:, ncol_pad:ncol_pad + ncol].reshape(COUT, nb, HOUT, HOUT),
        (1, 0, 2, 3))
    y8 = jnp.transpose(
        out[:, 2 * ncol_pad:2 * ncol_pad + lincol].reshape(
            COUT, nb, HOUT, LIN_OUT),
        (1, 0, 2, 3))
    return y5, y7, y8


def _reference(x0, x1, p):
    """Independent NumPy reference (direct ConvTranspose definition)."""
    x0 = np.asarray(x0, np.float32)
    x1 = np.asarray(x1, np.float32)
    w = np.asarray(p["w_ct"]); b = np.asarray(p["b_ct"])
    nb = x0.shape[0]
    conv = np.zeros((nb, COUT, HOUT, HOUT), np.float32)
    for n in range(nb):
        for ci in range(CIN):
            for co in range(COUT):
                for ih in range(HIN):
                    for iw in range(WIN):
                        for kh in range(K):
                            for kw in range(K):
                                oh = ih * STRIDE - PAD + kh
                                ow = iw * STRIDE - PAD + kw
                                if 0 <= oh < HOUT and 0 <= ow < HOUT:
                                    conv[n, co, oh, ow] += (
                                        x0[n, ci, ih, iw] * w[ci, co, kh, kw])
    conv += b[None, :, None, None]
    mean = x1.mean(axis=(0, 2, 3), keepdims=True)
    var = x1.var(axis=(0, 2, 3), keepdims=True)
    x1n = (x1 - mean) / np.sqrt(var + BN_EPS)
    x1n = (x1n * np.asarray(p["gamma"])[None, :, None, None]
           + np.asarray(p["beta"])[None, :, None, None])
    y0 = np.swapaxes(x1n, -2, -1)
    y1 = conv
    y2 = y1 + x1n
    y3 = -y1
    y4 = y0 + y3
    y5 = y0 + y2
    y6 = y4 + y0
    y7 = x1n + y6
    y8 = y5 @ np.asarray(p["w_lin"]).T + np.asarray(p["b_lin"])
    return y5, y7, y8


if __name__ == "__main__":
    key = jax.random.PRNGKey(0)
    k1, k2, k3, k4, k5, k6, k7, k8 = jax.random.split(key, 8)

    # Note: a freshly constructed BatchNorm2d has gamma=1, beta=0; random
    # values are used here to exercise the full affine path of the kernel.
    params = dict(
        w_ct=jax.random.normal(k1, (CIN, COUT, K, K), jnp.float32) * 0.2,
        b_ct=jax.random.normal(k2, (COUT,), jnp.float32) * 0.1,
        gamma=1.0 + 0.1 * jax.random.normal(k7, (COUT,), jnp.float32),
        beta=0.1 * jax.random.normal(k8, (COUT,), jnp.float32),
        w_lin=jax.random.normal(k3, (LIN_OUT, LIN_IN), jnp.float32) * 0.2,
        b_lin=jax.random.normal(k4, (LIN_OUT,), jnp.float32) * 0.1,
    )

    x0 = jax.random.normal(k5, (N, CIN, HIN, WIN), jnp.float32)
    x1 = jax.random.normal(k6, (N, COUT, HOUT, HOUT), jnp.float32)

    y5, y7, y8 = jax.block_until_ready(
        jax.jit(model_forward)(x0, x1, params))

    r5, r7, r8 = _reference(x0, x1, params)
    assert np.allclose(np.asarray(y5), r5, atol=1e-4, rtol=1e-4)
    assert np.allclose(np.asarray(y7), r7, atol=1e-4, rtol=1e-4)
    assert np.allclose(np.asarray(y8), r8, atol=1e-4, rtol=1e-4)

    print("KERNEL_OK")
</pallas_src>

<mosaic_0001>
module attributes {stable_mosaic.version = 11 : i64} {
  func.func @_fused_kernel(%arg0: memref<18x256xf32, #tpu.memory_space<vmem>>, %arg1: memref<3x18xf32, #tpu.memory_space<vmem>>, %arg2: memref<3x256xf32, #tpu.memory_space<vmem>>, %arg3: memref<3x256xf32, #tpu.memory_space<vmem>>, %arg4: memref<3x3xf32, #tpu.memory_space<vmem>>, %arg5: memref<256x384xf32, #tpu.memory_space<vmem>>, %arg6: memref<1x384xf32, #tpu.memory_space<vmem>>, %arg7: memref<3x896xf32, #tpu.memory_space<vmem>>) attributes {dimension_semantics = [], scalar_prefetch = 0 : i64, scratch_operands = 0 : i64, tpu.core_type = #tpu.core_type<tc>} {
    %c0 = arith.constant 0 : index
    %c0_0 = arith.constant 0 : index
    %0 = vector.load %arg4[%c0, %c0_0] : memref<3x3xf32, #tpu.memory_space<vmem>>, vector<3x3xf32>
    %1 = vector.extract_strided_slice %0 {offsets = [0, 0], sizes = [3, 1], strides = [1, 1]} : vector<3x3xf32> to vector<3x1xf32>
    %2 = vector.extract_strided_slice %0 {offsets = [0, 1], sizes = [3, 1], strides = [1, 1]} : vector<3x3xf32> to vector<3x1xf32>
    %3 = vector.extract_strided_slice %0 {offsets = [0, 2], sizes = [3, 1], strides = [1, 1]} : vector<3x3xf32> to vector<3x1xf32>
    %c0_1 = arith.constant 0 : index
    %c0_2 = arith.constant 0 : index
    %4 = vector.load %arg1[%c0_1, %c0_2] : memref<3x18xf32, #tpu.memory_space<vmem>>, vector<3x18xf32>
    %c0_3 = arith.constant 0 : index
    %c0_4 = arith.constant 0 : index
    %5 = vector.load %arg0[%c0_3, %c0_4] : memref<18x256xf32, #tpu.memory_space<vmem>>, vector<18x256xf32>
    %cst = arith.constant dense<0.000000e+00> : vector<3x256xf32>
    %6 = tpu.matmul %4, %5, %cst {dimension_numbers = #tpu.dot_dimension_numbers<[1], [0], [0], [1], [0, 0, 1, 1], [], []>, precision = #tpu.contract_precision<fp32>} : vector<3x18xf32>, vector<18x256xf32>, vector<3x256xf32> -> vector<3x256xf32>
    %7 = vector.broadcast %1 : vector<3x1xf32> to vector<3x256xf32>
    %8 = arith.addf %6, %7 : vector<3x256xf32>
    %c0_5 = arith.constant 0 : index
    %c0_6 = arith.constant 0 : index
    %9 = vector.load %arg2[%c0_5, %c0_6] : memref<3x256xf32, #tpu.memory_space<vmem>>, vector<3x256xf32>
    %10 = tpu.iota {dimensions = array<i32: 1>} : vector<1x256xi32>
    %c162_i32 = arith.constant 162 : i32
    %11 = vector.broadcast %c162_i32 : i32 to vector<1x256xi32>
    %12 = arith.cmpi slt, %10, %11 : vector<1x256xi32>
    %13 = arith.extui %12 : vector<1x256xi1> to vector<1x256xi32>
    %14 = arith.sitofp %13 : vector<1x256xi32> to vector<1x256xf32>
    %cst_7 = arith.constant dense<0.000000e+00> : vector<3xf32>
    %15 = vector.multi_reduction <add>, %9, %cst_7 [1] : vector<3x256xf32> to vector<3xf32>
    %16 = vector.shape_cast %15 : vector<3xf32> to vector<3x1xf32>
    %cst_8 = arith.constant 0.00617283955 : f32
    %17 = vector.broadcast %cst_8 : f32 to vector<3x1xf32>
    %18 = arith.mulf %16, %17 : vector<3x1xf32>
    %19 = vector.broadcast %18 : vector<3x1xf32> to vector<3x256xf32>
    %20 = arith.subf %9, %19 : vector<3x256xf32>
    %21 = vector.broadcast %14 : vector<1x256xf32> to vector<3x256xf32>
    %22 = arith.mulf %20, %21 : vector<3x256xf32>
    %23 = arith.mulf %22, %22 : vector<3x256xf32>
    %cst_9 = arith.constant dense<0.000000e+00> : vector<3xf32>
    %24 = vector.multi_reduction <add>, %23, %cst_9 [1] : vector<3x256xf32> to vector<3xf32>
    %25 = vector.shape_cast %24 : vector<3xf32> to vector<3x1xf32>
    %cst_10 = arith.constant 0.00617283955 : f32
    %26 = vector.broadcast %cst_10 : f32 to vector<3x1xf32>
    %27 = arith.mulf %25, %26 : vector<3x1xf32>
    %cst_11 = arith.constant 9.99999974E-6 : f32
    %28 = vector.broadcast %cst_11 : f32 to vector<3x1xf32>
    %29 = arith.addf %27, %28 : vector<3x1xf32>
    %30 = math.rsqrt %29 : vector<3x1xf32>
    %31 = arith.mulf %2, %30 : vector<3x1xf32>
    %32 = arith.mulf %18, %31 : vector<3x1xf32>
    %33 = arith.subf %3, %32 : vector<3x1xf32>
    %34 = vector.broadcast %31 : vector<3x1xf32> to vector<3x256xf32>
    %35 = arith.mulf %9, %34 : vector<3x256xf32>
    %36 = vector.broadcast %33 : vector<3x1xf32> to vector<3x256xf32>
    %37 = arith.addf %35, %36 : vector<3x256xf32>
    %c0_12 = arith.constant 0 : index
    %c0_13 = arith.constant 0 : index
    %38 = vector.load %arg3[%c0_12, %c0_13] : memref<3x256xf32, #tpu.memory_space<vmem>>, vector<3x256xf32>
    %39 = vector.broadcast %31 : vector<3x1xf32> to vector<3x256xf32>
    %40 = arith.mulf %38, %39 : vector<3x256xf32>
    %41 = vector.broadcast %33 : vector<3x1xf32> to vector<3x256xf32>
    %42 = arith.addf %40, %41 : vector<3x256xf32>
    %43 = arith.addf %42, %8 : vector<3x256xf32>
    %44 = arith.addf %43, %37 : vector<3x256xf32>
    %45 = arith.addf %37, %42 : vector<3x256xf32>
    %46 = arith.addf %45, %42 : vector<3x256xf32>
    %47 = arith.subf %46, %8 : vector<3x256xf32>
    %c0_14 = arith.constant 0 : index
    %c0_15 = arith.constant 0 : index
    %48 = vector.load %arg5[%c0_14, %c0_15] : memref<256x384xf32, #tpu.memory_space<vmem>>, vector<256x384xf32>
    %cst_16 = arith.constant dense<0.000000e+00> : vector<3x384xf32>
    %49 = tpu.matmul %44, %48, %cst_16 {dimension_numbers = #tpu.dot_dimension_numbers<[1], [0], [0], [1], [0, 0, 1, 1], [], []>, precision = #tpu.contract_precision<fp32>} : vector<3x256xf32>, vector<256x384xf32>, vector<3x384xf32> -> vector<3x384xf32>
    %c0_17 = arith.constant 0 : index
    %c0_18 = arith.constant 0 : index
    %50 = vector.load %arg6[%c0_17, %c0_18] : memref<1x384xf32, #tpu.memory_space<vmem>>, vector<1x384xf32>
    %51 = vector.broadcast %50 : vector<1x384xf32> to vector<3x384xf32>
    %52 = arith.addf %49, %51 : vector<3x384xf32>
    %c0_19 = arith.constant 0 : index
    %c0_20 = arith.constant 0 : index
    %53 = vector.load %arg7[%c0_19, %c0_20] : memref<3x896xf32, #tpu.memory_space<vmem>>, vector<3x256xf32>
    tpu.vector_store %arg7[%c0_19, %c0_20], %44 {strides = array<i32>} : memref<3x896xf32, #tpu.memory_space<vmem>>, vector<3x256xf32>,
    %c0_21 = arith.constant 0 : index
    %c256 = arith.constant 256 : index
    %54 = vector.load %arg7[%c0_21, %c256] : memref<3x896xf32, #tpu.memory_space<vmem>>, vector<3x256xf32>
    tpu.vector_store %arg7[%c0_21, %c256], %47 {strides = array<i32>} : memref<3x896xf32, #tpu.memory_space<vmem>>, vector<3x256xf32>,
    %c0_22 = arith.constant 0 : index
    %c512 = arith.constant 512 : index
    %55 = vector.load %arg7[%c0_22, %c512] : memref<3x896xf32, #tpu.memory_space<vmem>>, vector<3x384xf32>
    tpu.vector_store %arg7[%c0_22, %c512], %52 {strides = array<i32>} : memref<3x896xf32, #tpu.memory_space<vmem>>, vector<3x384xf32>,
    return
  }
}

</mosaic_0001>

<llo_original>
// kernel: tile.8
$region0: #{tile.8}
  #allocation0 [shape = 's32[1]{0}', space=sflag, size = 0x4, scoped, tag = 'scoped memory for tile.8']
  %s0 = inlined_call_operand.vmem [shape: f32[20], index: 0, kind: input, shape index: {}]
  %s1 = inlined_call_operand.vmem [shape: f32[18,20], index: 1, kind: output, shape index: {}]
  // Predicated region
  $region2: #{tile.8} parent=0 // pred_check
    _
  $region3: #{tile.8} parent=0 // pred_check_branch
    %3 = sbr.rel (0) target = $region5
  $region4: #{tile.8} parent=0 // pred_region
    _
  $region5: #{tile.8} parent=0 // pred_fallthru
    _
  %v4 = vld [vmem:[%s0] ss:$0 sm:$0xff]
  %5 = vst [vmem:[%s1] sm:$0xff] %v4
  %s6 = scalar_lea.vmem %s1, 8
  %7 = vst [vmem:[%s6] sm:$0xff] %v4
  %s8 = scalar_lea.vmem %s1, 16
  %9 = vst [vmem:[%s8] sm:$0xff] %v4

// kernel: tile.9
$region0: #{tile.9}
  %s0 = inlined_call_operand.vmem [shape: f32[18,20], index: 0, kind: input, shape index: {}]
  %s1 = inlined_call_operand.vmem [shape: f32[360], index: 1, kind: output, shape index: {}]
  $region1: #{tile.9} parent=0
    #allocation0 [shape = 'u8[4096]{0}', space=vmem, size = 0x1000, scoped, tag = 'scoped mem for output reshape']
    %v2 = vld [vmem:[%s0] sm:$0x1]
    %vm3 = vcmask 162816
    %4 = vst.msk [vmem:[#allocation0] sm:$0x1] %vm3, %v2
    %s5 = scalar_lea.vmem %s0, 6
    %v6 = vld [vmem:[%s5] sm:$0x1]
    %s7 = scalar_lea.vmem %s0, 6
    %v8 = vld [vmem:[%s7] sm:$0x1]
    %vm9 = vcmask 64512
    %v10 = vsel %vm9, %v8, %v6
    %11 = vrot.lane.b32.xlu0 %v10, 120
    %v12 = vpop.permute.xlu0 %11
    %vm13 = vcmask 97280
    %s14 = scalar_lea.vmem [#allocation0], 1
    %15 = vst.msk [vmem:[%s14] sm:$0x1] %vm13, %v12
    %vm16 = vcmask 1048512
    %17 = vst.msk [vmem:[#allocation0] sm:$0x1] %vm16, %v12
    %s18 = scalar_lea.vmem %s0, 12
    %v19 = vld [vmem:[%s18] sm:$0x1]
    %s20 = scalar_lea.vmem %s0, 12
    %v21 = vld [vmem:[%s20] sm:$0x1]
    %vm22 = vcmask 130048
    %v23 = vsel %vm22, %v21, %v19
    %24 = vrot.lane.b32.xlu0 %v23, 112
    %v25 = vpop.permute.xlu0 %24
    %vm26 = vcmask 31744
    %s27 = scalar_lea.vmem [#allocation0], 2
    %28 = vst.msk [vmem:[%s27] sm:$0x1] %vm26, %v25
    %vm29 = vcmask 1048448
    %s30 = scalar_lea.vmem [#allocation0], 1
    %31 = vst.msk [vmem:[%s30] sm:$0x1] %vm29, %v25
    %s32 = scalar_lea.vmem %s0, 5
    %v33 = vld [vmem:[%s32] sm:$0x1]
    %34 = vrot.lane.b32.xlu0 %v33, 100
    %v35 = vpop.permute.xlu0 %34
    %vm36 = vcmask 982816
    %37 = vst.msk [vmem:[#allocation0] sm:$0x1] %vm36, %v35
    %s38 = scalar_lea.vmem %s0, 11
    %v39 = vld [vmem:[%s38] sm:$0x1]
    %40 = vrot.lane.b32.xlu0 %v39, 92
    %v41 = vpop.permute.xlu0 %40
    %vm42 = vcmask 917216
    %s43 = scalar_lea.vmem [#allocation0], 1
    %44 = vst.msk [vmem:[%s43] sm:$0x1] %vm42, %v41
    %s45 = scalar_lea.vmem %s0, 17
    %v46 = vld [vmem:[%s45] sm:$0x1]
    %47 = vrot.lane.b32.xlu0 %v46, 84
    %v48 = vpop.permute.xlu0 %47
    %vm49 = vcmask 851616
    %s50 = scalar_lea.vmem [#allocation0], 2
    %51 = vst.msk [vmem:[%s50] sm:$0x1] %vm49, %v48
    %s52 = scalar_lea.vmem %s0, 4
    %v53 = vld [vmem:[%s52] sm:$0x1]
    %54 = vrot.lane.b32.xlu0 %v53, 80
    %v55 = vpop.permute.xlu0 %54
    %vm56 = vcmask 818816
    %57 = vst.msk [vmem:[#allocation0] sm:$0x1] %vm56, %v55
    %s58 = scalar_lea.vmem %s0, 10
    %v59 = vld [vmem:[%s58] sm:$0x1]
    %60 = vrot.lane.b32.xlu0 %v59, 72
    %v61 = vpop.permute.xlu0 %60
    %vm62 = vcmask 753216
    %s63 = scalar_lea.vmem [#allocation0], 1
    %64 = vst.msk [vmem:[%s63] sm:$0x1] %vm62, %v61
    %s65 = scalar_lea.vmem %s0, 16
    %v66 = vld [vmem:[%s65] sm:$0x1]
    %67 = vrot.lane.b32.xlu0 %v66, 64
    %v68 = vpop.permute.xlu0 %67
    %vm69 = vcmask 687616
    %s70 = scalar_lea.vmem [#allocation0], 2
    %71 = vst.msk [vmem:[%s70] sm:$0x1] %vm69, %v68
    %s72 = scalar_lea.vmem %s0, 3
    %v73 = vld [vmem:[%s72] sm:$0x1]
    %74 = vrot.lane.b32.xlu0 %v73, 60
    %v75 = vpop.permute.xlu0 %74
    %vm76 = vcmask 654816
    %77 = vst.msk [vmem:[#allocation0] sm:$0x1] %vm76, %v75
    %s78 = scalar_lea.vmem %s0, 9
    %v79 = vld [vmem:[%s78] sm:$0x1]
    %80 = vrot.lane.b32.xlu0 %v79, 52
    %v81 = vpop.permute.xlu0 %80
    %vm82 = vcmask 589216
    %s83 = scalar_lea.vmem [#allocation0], 1
    %84 = vst.msk [vmem:[%s83] sm:$0x1] %vm82, %v81
    %s85 = scalar_lea.vmem %s0, 15
    %v86 = vld [vmem:[%s85] sm:$0x1]
    %87 = vrot.lane.b32.xlu0 %v86, 44
    %v88 = vpop.permute.xlu0 %87
    %vm89 = vcmask 523616
    %s90 = scalar_lea.vmem [#allocation0], 2
    %91 = vst.msk [vmem:[%s90] sm:$0x1] %vm89, %v88
    %s92 = scalar_lea.vmem %s0, 2
    %v93 = vld [vmem:[%s92] sm:$0x1]
    %94 = vrot.lane.b32.xlu0 %v93, 40
    %v95 = vpop.permute.xlu0 %94
    %vm96 = vcmask 490816
    %97 = vst.msk [vmem:[#allocation0] sm:$0x1] %vm96, %v95
    %s98 = scalar_lea.vmem %s0, 8
    %v99 = vld [vmem:[%s98] sm:$0x1]
    %100 = vrot.lane.b32.xlu0 %v99, 32
    %v101 = vpop.permute.xlu0 %100
    %vm102 = vcmask 425216
    %s103 = scalar_lea.vmem [#allocation0], 1
    %104 = vst.msk [vmem:[%s103] sm:$0x1] %vm102, %v101
    %s105 = scalar_lea.vmem %s0, 14
    %v106 = vld [vmem:[%s105] sm:$0x1]
    %107 = vrot.lane.b32.xlu0 %v106, 24
    %v108 = vpop.permute.xlu0 %107
    %vm109 = vcmask 359616
    %s110 = scalar_lea.vmem [#allocation0], 2
    %111 = vst.msk [vmem:[%s110] sm:$0x1] %vm109, %v108
    %s112 = scalar_lea.vmem %s0, 1
    %v113 = vld [vmem:[%s112] sm:$0x1]
    %114 = vrot.lane.b32.xlu0 %v113, 20
    %v115 = vpop.permute.xlu0 %114
    %vm116 = vcmask 326816
    %117 = vst.msk [vmem:[#allocation0] sm:$0x1] %vm116, %v115
    %s118 = scalar_lea.vmem %s0, 7
    %v119 = vld [vmem:[%s118] sm:$0x1]
    %120 = vrot.lane.b32.xlu0 %v119, 12
    %v121 = vpop.permute.xlu0 %120
    %vm122 = vcmask 261216
    %s123 = scalar_lea.vmem [#allocation0], 1
    %124 = vst.msk [vmem:[%s123] sm:$0x1] %vm122, %v121
    %s125 = scalar_lea.vmem %s0, 13
    %v126 = vld [vmem:[%s125] sm:$0x1]
    %127 = vrot.lane.b32.xlu0 %v126, 4
    %v128 = vpop.permute.xlu0 %127
    %vm129 = vcmask 195616
    %s130 = scalar_lea.vmem [#allocation0], 2
    %131 = vst.msk [vmem:[%s130] sm:$0x1] %vm129, %v128
    %s133 = ssub.s32 16, 1
    %v134 = vld [vmem:[#allocation0] sm:%s133]
    %s136 = ssub.s32 16, 1
    %137 = vst [vmem:[%s1] sm:%s136] %v134

// kernel: model_forward.1
$region0: #{model_forward.1}
  #allocation0 [shape = 'u32[]', space=smem, size = 0x4, offset = 0x4, fixed_abs, tag = 'smem constant byte address 0x4 - core index']
  #allocation1 [shape = 'u32[72,128]{1,0:T(1,128)}', space=vmem, size = 0x9000, scoped, tag = 'internal scratch']
  %s0 = inlined_call_operand.vmem [shape: f32[18,256], index: 0, kind: input, shape index: {}]
  %s1 = inlined_call_operand.vmem [shape: f32[3,18], index: 1, kind: input, shape index: {}]
  %s2 = inlined_call_operand.vmem [shape: f32[3,256], index: 2, kind: input, shape index: {}]
  %s3 = inlined_call_operand.vmem [shape: f32[3,256], index: 3, kind: input, shape index: {}]
  %s4 = inlined_call_operand.vmem [shape: f32[3,3], index: 4, kind: input, shape index: {}]
  %s5 = inlined_call_operand.vmem [shape: f32[256,384], index: 5, kind: input, shape index: {}]
  %s6 = inlined_call_operand.vmem [shape: f32[1,384], index: 6, kind: input, shape index: {}]
  %s7 = inlined_call_operand.vmem [shape: f32[3,896], index: 7, kind: output, shape index: {}]
  %s8 = sld [smem:[#allocation0]]
  $region38: #{model_forward.1} parent=0
    _
  %s10 = ssub.s32 1, %s8
  %s11 = scalar_select 0, %s10, %s8
  // Predicated region
  $region2: #{model_forward.1} parent=0 // pred_check
    _
  $region3: #{model_forward.1} parent=0 // pred_check_branch
    %13 = sbr.rel (0) target = $region5
  $region4: #{model_forward.1} parent=0 // pred_region
    _
  $region5: #{model_forward.1} parent=0 // pred_fallthru
    _
  // Predicated region
  $region6: #{model_forward.1} parent=0 // pred_check
    _
  $region7: #{model_forward.1} parent=0 // pred_check_branch
    %15 = sbr.rel (0) target = $region9
  $region8: #{model_forward.1} parent=0 // pred_region
    _
  $region9: #{model_forward.1} parent=0 // pred_fallthru
    _
  // Predicated region
  $region10: #{model_forward.1} parent=0 // pred_check
    _
  $region11: #{model_forward.1} parent=0 // pred_check_branch
    %17 = sbr.rel (0) target = $region13
  $region12: #{model_forward.1} parent=0 // pred_region
    _
  $region13: #{model_forward.1} parent=0 // pred_fallthru
    _
  // Predicated region
  $region14: #{model_forward.1} parent=0 // pred_check
    _
  $region15: #{model_forward.1} parent=0 // pred_check_branch
    %19 = sbr.rel (0) target = $region17
  $region16: #{model_forward.1} parent=0 // pred_region
    _
  $region17: #{model_forward.1} parent=0 // pred_fallthru
    _
  // Predicated region
  $region18: #{model_forward.1} parent=0 // pred_check
    _
  $region19: #{model_forward.1} parent=0 // pred_check_branch
    %21 = sbr.rel (0) target = $region21
  $region20: #{model_forward.1} parent=0 // pred_region
    _
  $region21: #{model_forward.1} parent=0 // pred_fallthru
    _
  // Predicated region
  $region22: #{model_forward.1} parent=0 // pred_check
    _
  $region23: #{model_forward.1} parent=0 // pred_check_branch
    %23 = sbr.rel (0) target = $region25
  $region24: #{model_forward.1} parent=0 // pred_region
    _
  $region25: #{model_forward.1} parent=0 // pred_fallthru
    _
  // Predicated region
  $region26: #{model_forward.1} parent=0 // pred_check
    _
  $region27: #{model_forward.1} parent=0 // pred_check_branch
    %25 = sbr.rel (0) target = $region29
  $region28: #{model_forward.1} parent=0 // pred_region
    _
  $region29: #{model_forward.1} parent=0 // pred_fallthru
    _
  %v26 = vld [vmem:[%s4] sm:$0x7]
  %v27 = vld [vmem:[%s1] sm:$0x7]
  %v28 = vld [vmem:[%s0] sm:$0xff]
  %v29 = vld [vmem:[%s0 + $0x8] sm:$0xff]
  %v30 = vld [vmem:[%s0 + $0x10] sm:$0xff]
  %v31 = vld [vmem:[%s0 + $0x18] sm:$0xff]
  %v32 = vld [vmem:[%s0 + $0x20] sm:$0x3]
  %v33 = vld [vmem:[%s0 + $0x28] sm:$0x3]
  %35 = vset.pattern.permute.xlu0 0
  %36 = vperm.xlu0 %35, %v26
  %v37 = vpop.permute.xlu0 %36
  %vm39 = vcmask 146432
  %v41 = vsel %vm39, %v27, 0
  %vm43 = vcmask 1041408
  %v45 = vsel %vm43, %v32, 0
  %v48 = vsel %vm43, %v33, 0
  %50 = vmatpush.msra.mxu0 0.0
  %51 = vmatpush.msra.mxu0 0.0
  %52 = vmatpush.msra.mxu0 0.0
  %53 = vmatpush.msra.mxu0 0.0
  %54 = vmatpush.msra.mxu0 0.0
  %55 = vmatpush.msra.mxu0 0.0
  %56 = vmatpush.msra.mxu0 0.0
  %57 = vmatpush.msra.mxu0 0.0
  %58 = vmatpush.msra.mxu0 0.0
  %59 = vmatpush.msra.mxu0 0.0
  %60 = vmatpush.msra.mxu0 0.0
  %61 = vmatpush.msra.mxu0 0.0
  %62 = vmatpush.msra.mxu0 0.0
  %v63 = vand.u32 %v45, 4294901760
  %64 = vmatpush.msra.mxu0 %v63
  %v65 = vand.u32 %v30, 4294901760
  %66 = vmatpush.msra.mxu0 %v65
  %v67 = vand.u32 %v28, 4294901760
  %68 = vmatpush.msra.mxu0 %v67
  %v69 = vand.u32 %v41, 4294901760
  %v70 = vsub.f32 %v41, %v69
  %v71 = vand.u32 %v70, 4294901760
  %v72 = vsub.f32 %v70, %v71
  %v73 = vand.u32 %v72, 4294901760
  %74 = vmatmul.f32.gmra.mxu0 %v73
  %v75 = vpop.f32.mrf.mxu0
  %v76 = vadd.f32 %v37, %v75
  %77 = vdwg.mxu0
  %78 = vmatpush.msra.mxu0 0.0
  %79 = vmatpush.msra.mxu0 0.0
  %80 = vmatpush.msra.mxu0 0.0
  %81 = vmatpush.msra.mxu0 0.0
  %82 = vmatpush.msra.mxu0 0.0
  %83 = vmatpush.msra.mxu0 0.0
  %84 = vmatpush.msra.mxu0 0.0
  %85 = vmatpush.msra.mxu0 0.0
  %86 = vmatpush.msra.mxu0 0.0
  %87 = vmatpush.msra.mxu0 0.0
  %88 = vmatpush.msra.mxu0 0.0
  %89 = vmatpush.msra.mxu0 0.0
  %90 = vmatpush.msra.mxu0 0.0
  %v91 = vand.u32 %v45, 4294901760
  %v92 = vsub.f32 %v45, %v91
  %v93 = vand.u32 %v92, 4294901760
  %v94 = vsub.f32 %v92, %v93
  %v95 = vand.u32 %v94, 4294901760
  %96 = vmatpush.msra.mxu0 %v95
  %v97 = vand.u32 %v30, 4294901760
  %v98 = vsub.f32 %v30, %v97
  %v99 = vand.u32 %v98, 4294901760
  %v100 = vsub.f32 %v98, %v99
  %v101 = vand.u32 %v100, 4294901760
  %102 = vmatpush.msra.mxu0 %v101
  %v103 = vand.u32 %v28, 4294901760
  %v104 = vsub.f32 %v28, %v103
  %v105 = vand.u32 %v104, 4294901760
  %v106 = vsub.f32 %v104, %v105
  %v107 = vand.u32 %v106, 4294901760
  %108 = vmatpush.msra.mxu0 %v107
  %v109 = vand.u32 %v41, 4294901760
  %110 = vmatmul.f32.gmra.mxu0 %v109
  %v111 = vpop.f32.mrf.mxu0
  %v112 = vadd.f32 %v76, %v111
  %113 = vdwg.mxu0
  %114 = vmatpush.msra.mxu0 0.0
  %115 = vmatpush.msra.mxu0 0.0
  %116 = vmatpush.msra.mxu0 0.0
  %117 = vmatpush.msra.mxu0 0.0
  %118 = vmatpush.msra.mxu0 0.0
  %119 = vmatpush.msra.mxu0 0.0
  %120 = vmatpush.msra.mxu0 0.0
  %121 = vmatpush.msra.mxu0 0.0
  %122 = vmatpush.msra.mxu0 0.0
  %123 = vmatpush.msra.mxu0 0.0
  %124 = vmatpush.msra.mxu0 0.0
  %125 = vmatpush.msra.mxu0 0.0
  %126 = vmatpush.msra.mxu0 0.0
  %v127 = vand.u32 %v45, 4294901760
  %v128 = vsub.f32 %v45, %v127
  %129 = vmatpush.msra.mxu0 %v128
  %v130 = vand.u32 %v30, 4294901760
  %v131 = vsub.f32 %v30, %v130
  %132 = vmatpush.msra.mxu0 %v131
  %v133 = vand.u32 %v28, 4294901760
  %v134 = vsub.f32 %v28, %v133
  %135 = vmatpush.msra.mxu0 %v134
  %v136 = vand.u32 %v41, 4294901760
  %v137 = vsub.f32 %v41, %v136
  %138 = vmatmul.f32.gmra.mxu0 %v137
  %v139 = vpop.f32.mrf.mxu0
  %v140 = vadd.f32 %v112, %v139
  %141 = vdwg.mxu0
  %142 = vmatpush.msra.mxu0 0.0
  %143 = vmatpush.msra.mxu0 0.0
  %144 = vmatpush.msra.mxu0 0.0
  %145 = vmatpush.msra.mxu0 0.0
  %146 = vmatpush.msra.mxu0 0.0
  %147 = vmatpush.msra.mxu0 0.0
  %148 = vmatpush.msra.mxu0 0.0
  %149 = vmatpush.msra.mxu0 0.0
  %150 = vmatpush.msra.mxu0 0.0
  %151 = vmatpush.msra.mxu0 0.0
  %152 = vmatpush.msra.mxu0 0.0
  %153 = vmatpush.msra.mxu0 0.0
  %154 = vmatpush.msra.mxu0 0.0
  %v155 = vand.u32 %v45, 4294901760
  %156 = vmatpush.msra.mxu0 %v155
  %v157 = vand.u32 %v30, 4294901760
  %158 = vmatpush.msra.mxu0 %v157
  %v159 = vand.u32 %v28, 4294901760
  %160 = vmatpush.msra.mxu0 %v159
  %v161 = vand.u32 %v41, 4294901760
  %v162 = vsub.f32 %v41, %v161
  %v163 = vand.u32 %v162, 4294901760
  %164 = vmatmul.f32.gmra.mxu0 %v163
  %v165 = vpop.f32.mrf.mxu0
  %v166 = vadd.f32 %v140, %v165
  %167 = vdwg.mxu0
  %168 = vmatpush.msra.mxu0 0.0
  %169 = vmatpush.msra.mxu0 0.0
  %170 = vmatpush.msra.mxu0 0.0
  %171 = vmatpush.msra.mxu0 0.0
  %172 = vmatpush.msra.mxu0 0.0
  %173 = vmatpush.msra.mxu0 0.0
  %174 = vmatpush.msra.mxu0 0.0
  %175 = vmatpush.msra.mxu0 0.0
  %176 = vmatpush.msra.mxu0 0.0
  %177 = vmatpush.msra.mxu0 0.0
  %178 = vmatpush.msra.mxu0 0.0
  %179 = vmatpush.msra.mxu0 0.0
  %180 = vmatpush.msra.mxu0 0.0
  %v181 = vand.u32 %v45, 4294901760
  %v182 = vsub.f32 %v45, %v181
  %v183 = vand.u32 %v182, 4294901760
  %184 = vmatpush.msra.mxu0 %v183
  %v185 = vand.u32 %v30, 4294901760
  %v186 = vsub.f32 %v30, %v185
  %v187 = vand.u32 %v186, 4294901760
  %188 = vmatpush.msra.mxu0 %v187
  %v189 = vand.u32 %v28, 4294901760
  %v190 = vsub.f32 %v28, %v189
  %v191 = vand.u32 %v190, 4294901760
  %192 = vmatpush.msra.mxu0 %v191
  %v193 = vand.u32 %v41, 4294901760
  %194 = vmatmul.f32.gmra.mxu0 %v193
  %v195 = vpop.f32.mrf.mxu0
  %v196 = vadd.f32 %v166, %v195
  %197 = vdwg.mxu0
  %198 = vmatpush.msra.mxu0 0.0
  %199 = vmatpush.msra.mxu0 0.0
  %200 = vmatpush.msra.mxu0 0.0
  %201 = vmatpush.msra.mxu0 0.0
  %202 = vmatpush.msra.mxu0 0.0
  %203 = vmatpush.msra.mxu0 0.0
  %204 = vmatpush.msra.mxu0 0.0
  %205 = vmatpush.msra.mxu0 0.0
  %206 = vmatpush.msra.mxu0 0.0
  %207 = vmatpush.msra.mxu0 0.0
  %208 = vmatpush.msra.mxu0 0.0
  %209 = vmatpush.msra.mxu0 0.0
  %210 = vmatpush.msra.mxu0 0.0
  %v211 = vand.u32 %v45, 4294901760
  %212 = vmatpush.msra.mxu0 %v211
  %v213 = vand.u32 %v30, 4294901760
  %214 = vmatpush.msra.mxu0 %v213
  %v215 = vand.u32 %v28, 4294901760
  %216 = vmatpush.msra.mxu0 %v215
  %v217 = vand.u32 %v41, 4294901760
  %218 = vmatmul.f32.gmra.mxu0 %v217
  %v219 = vpop.f32.mrf.mxu0
  %v220 = vadd.f32 %v196, %v219
  %221 = vdwg.mxu0
  %222 = vmatpush.msra.mxu0 0.0
  %223 = vmatpush.msra.mxu0 0.0
  %224 = vmatpush.msra.mxu0 0.0
  %225 = vmatpush.msra.mxu0 0.0
  %226 = vmatpush.msra.mxu0 0.0
  %227 = vmatpush.msra.mxu0 0.0
  %228 = vmatpush.msra.mxu0 0.0
  %229 = vmatpush.msra.mxu0 0.0
  %230 = vmatpush.msra.mxu0 0.0
  %231 = vmatpush.msra.mxu0 0.0
  %232 = vmatpush.msra.mxu0 0.0
  %233 = vmatpush.msra.mxu0 0.0
  %234 = vmatpush.msra.mxu0 0.0
  %v235 = vand.u32 %v48, 4294901760
  %236 = vmatpush.msra.mxu0 %v235
  %v237 = vand.u32 %v31, 4294901760
  %238 = vmatpush.msra.mxu0 %v237
  %v239 = vand.u32 %v29, 4294901760
  %240 = vmatpush.msra.mxu0 %v239
  %v241 = vand.u32 %v41, 4294901760
  %v242 = vsub.f32 %v41, %v241
  %v243 = vand.u32 %v242, 4294901760
  %v244 = vsub.f32 %v242, %v243
  %v245 = vand.u32 %v244, 4294901760
  %246 = vmatmul.f32.gmra.mxu0 %v245
  %v247 = vpop.f32.mrf.mxu0
  %v248 = vadd.f32 %v37, %v247
  %249 = vdwg.mxu0
  %250 = vmatpush.msra.mxu0 0.0
  %251 = vmatpush.msra.mxu0 0.0
  %252 = vmatpush.msra.mxu0 0.0
  %253 = vmatpush.msra.mxu0 0.0
  %254 = vmatpush.msra.mxu0 0.0
  %255 = vmatpush.msra.mxu0 0.0
  %256 = vmatpush.msra.mxu0 0.0
  %257 = vmatpush.msra.mxu0 0.0
  %258 = vmatpush.msra.mxu0 0.0
  %259 = vmatpush.msra.mxu0 0.0
  %260 = vmatpush.msra.mxu0 0.0
  %261 = vmatpush.msra.mxu0 0.0
  %262 = vmatpush.msra.mxu0 0.0
  %v263 = vand.u32 %v48, 4294901760
  %v264 = vsub.f32 %v48, %v263
  %v265 = vand.u32 %v264, 4294901760
  %v266 = vsub.f32 %v264, %v265
  %v267 = vand.u32 %v266, 4294901760
  %268 = vmatpush.msra.mxu0 %v267
  %v269 = vand.u32 %v31, 4294901760
  %v270 = vsub.f32 %v31, %v269
  %v271 = vand.u32 %v270, 4294901760
  %v272 = vsub.f32 %v270, %v271
  %v273 = vand.u32 %v272, 4294901760
  %274 = vmatpush.msra.mxu0 %v273
  %v275 = vand.u32 %v29, 4294901760
  %v276 = vsub.f32 %v29, %v275
  %v277 = vand.u32 %v276, 4294901760
  %v278 = vsub.f32 %v276, %v277
  %v279 = vand.u32 %v278, 4294901760
  %280 = vmatpush.msra.mxu0 %v279
  %v281 = vand.u32 %v41, 4294901760
  %282 = vmatmul.f32.gmra.mxu0 %v281
  %v283 = vpop.f32.mrf.mxu0
  %v284 = vadd.f32 %v248, %v283
  %285 = vdwg.mxu0
  %286 = vmatpush.msra.mxu0 0.0
  %287 = vmatpush.msra.mxu0 0.0
  %288 = vmatpush.msra.mxu0 0.0
  %289 = vmatpush.msra.mxu0 0.0
  %290 = vmatpush.msra.mxu0 0.0
  %291 = vmatpush.msra.mxu0 0.0
  %292 = vmatpush.msra.mxu0 0.0
  %293 = vmatpush.msra.mxu0 0.0
  %294 = vmatpush.msra.mxu0 0.0
  %295 = vmatpush.msra.mxu0 0.0
  %296 = vmatpush.msra.mxu0 0.0
  %297 = vmatpush.msra.mxu0 0.0
  %298 = vmatpush.msra.mxu0 0.0
  %v299 = vand.u32 %v48, 4294901760
  %v300 = vsub.f32 %v48, %v299
  %301 = vmatpush.msra.mxu0 %v300
  %v302 = vand.u32 %v31, 4294901760
  %v303 = vsub.f32 %v31, %v302
  %304 = vmatpush.msra.mxu0 %v303
  %v305 = vand.u32 %v29, 4294901760
  %v306 = vsub.f32 %v29, %v305
  %307 = vmatpush.msra.mxu0 %v306
  %v308 = vand.u32 %v41, 4294901760
  %v309 = vsub.f32 %v41, %v308
  %310 = vmatmul.f32.gmra.mxu0 %v309
  %v311 = vpop.f32.mrf.mxu0
  %v312 = vadd.f32 %v284, %v311
  %313 = vdwg.mxu0
  %314 = vmatpush.msra.mxu0 0.0
  %315 = vmatpush.msra.mxu0 0.0
  %316 = vmatpush.msra.mxu0 0.0
  %317 = vmatpush.msra.mxu0 0.0
  %318 = vmatpush.msra.mxu0 0.0
  %319 = vmatpush.msra.mxu0 0.0
  %320 = vmatpush.msra.mxu0 0.0
  %321 = vmatpush.msra.mxu0 0.0
  %322 = vmatpush.msra.mxu0 0.0
  %323 = vmatpush.msra.mxu0 0.0
  %324 = vmatpush.msra.mxu0 0.0
  %325 = vmatpush.msra.mxu0 0.0
  %326 = vmatpush.msra.mxu0 0.0
  %v327 = vand.u32 %v48, 4294901760
  %328 = vmatpush.msra.mxu0 %v327
  %v329 = vand.u32 %v31, 4294901760
  %330 = vmatpush.msra.mxu0 %v329
  %v331 = vand.u32 %v29, 4294901760
  %332 = vmatpush.msra.mxu0 %v331
  %v333 = vand.u32 %v41, 4294901760
  %v334 = vsub.f32 %v41, %v333
  %v335 = vand.u32 %v334, 4294901760
  %336 = vmatmul.f32.gmra.mxu0 %v335
  %v337 = vpop.f32.mrf.mxu0
  %v338 = vadd.f32 %v312, %v337
  %339 = vdwg.mxu0
  %340 = vmatpush.msra.mxu0 0.0
  %341 = vmatpush.msra.mxu0 0.0
  %342 = vmatpush.msra.mxu0 0.0
  %343 = vmatpush.msra.mxu0 0.0
  %344 = vmatpush.msra.mxu0 0.0
  %345 = vmatpush.msra.mxu0 0.0
  %346 = vmatpush.msra.mxu0 0.0
  %347 = vmatpush.msra.mxu0 0.0
  %348 = vmatpush.msra.mxu0 0.0
  %349 = vmatpush.msra.mxu0 0.0
  %350 = vmatpush.msra.mxu0 0.0
  %351 = vmatpush.msra.mxu0 0.0
  %352 = vmatpush.msra.mxu0 0.0
  %v353 = vand.u32 %v48, 4294901760
  %v354 = vsub.f32 %v48, %v353
  %v355 = vand.u32 %v354, 4294901760
  %356 = vmatpush.msra.mxu0 %v355
  %v357 = vand.u32 %v31, 4294901760
  %v358 = vsub.f32 %v31, %v357
  %v359 = vand.u32 %v358, 4294901760
  %360 = vmatpush.msra.mxu0 %v359
  %v361 = vand.u32 %v29, 4294901760
  %v362 = vsub.f32 %v29, %v361
  %v363 = vand.u32 %v362, 4294901760
  %364 = vmatpush.msra.mxu0 %v363
  %v365 = vand.u32 %v41, 4294901760
  %366 = vmatmul.f32.gmra.mxu0 %v365
  %v367 = vpop.f32.mrf.mxu0
  %v368 = vadd.f32 %v338, %v367
  %369 = vdwg.mxu0
  %370 = vmatpush.msra.mxu0 0.0
  %371 = vmatpush.msra.mxu0 0.0
  %372 = vmatpush.msra.mxu0 0.0
  %373 = vmatpush.msra.mxu0 0.0
  %374 = vmatpush.msra.mxu0 0.0
  %375 = vmatpush.msra.mxu0 0.0
  %376 = vmatpush.msra.mxu0 0.0
  %377 = vmatpush.msra.mxu0 0.0
  %378 = vmatpush.msra.mxu0 0.0
  %379 = vmatpush.msra.mxu0 0.0
  %380 = vmatpush.msra.mxu0 0.0
  %381 = vmatpush.msra.mxu0 0.0
  %382 = vmatpush.msra.mxu0 0.0
  %v383 = vand.u32 %v48, 4294901760
  %384 = vmatpush.msra.mxu0 %v383
  %v385 = vand.u32 %v31, 4294901760
  %386 = vmatpush.msra.mxu0 %v385
  %v387 = vand.u32 %v29, 4294901760
  %388 = vmatpush.msra.mxu0 %v387
  %v389 = vand.u32 %v41, 4294901760
  %390 = vmatmul.f32.gmra.mxu0 %v389
  %v391 = vpop.f32.mrf.mxu0
  %v392 = vadd.f32 %v368, %v391
  %393 = vdwg.mxu0
  %v394 = vld [vmem:[%s2] sm:$0x77]
  %v395 = vlaneseq
  %v396 = vand.u32 %v395, 127
  %v397 = vadd.s32 %v396, 128
  %vm398 = vcmp.lt.s32.totalorder %v396, 162
  %vm399 = vcmp.lt.s32.totalorder %v397, 162
  %v400 = vsel %vm398, 1, 0
  %v401 = vsel %vm399, 1, 0
  %v402 = vcvt.s32.f32 %v400
  %v403 = vcvt.s32.f32 %v401
  %405 = vst [vmem:[#allocation1] ss:$2 sm:$0xff] %v394
  %v406 = vld.sshfl [vmem:[#allocation1] sm:$0xff pattern:$0x75316420]
  %v407 = vld.sshfl [vmem:[#allocation1 + $0x8] sm:$0xff pattern:$0x75316420]
  %vm410 = vcmask 1042432
  %v411 = vsel %vm410, %v406, 0.0
  %v412 = vsel %vm410, %v407, 0.0
  %v413 = vadd.f32 %v411, %v412
  %414 = vadd.xlane.f32.xlu0 %v413
  %v415 = vpop.xlane.xlu0 %414
  %v416 = vmul.f32 %v415, 0.0061728396
  %v419 = vunpack.c.l.s4 839922192
  %v420 = vunpack.c.0.s8 %v419
  %v421 = vperm.slane %v416, %v420
  %v423 = vsub.f32 %v394, %v421
  %v426 = vrot.slane %v403, 4
  %vm427 = vcmask 1043456
  %v428 = vsel %vm427, %v402, %v426
  %v430 = vmul.f32 %v423, %v428
  %v431 = vmul.f32 %v430, %v430
  %433 = vst [vmem:[#allocation1] ss:$2 sm:$0xff] %v431
  %v434 = vld.sshfl [vmem:[#allocation1] sm:$0xff pattern:$0x75316420]
  %v435 = vld.sshfl [vmem:[#allocation1 + $0x8] sm:$0xff pattern:$0x75316420]
  %v438 = vsel %vm410, %v434, 0.0
  %v439 = vsel %vm410, %v435, 0.0
  %v440 = vadd.f32 %v438, %v439
  %441 = vadd.xlane.f32.xlu0 %v440
  %v442 = vpop.xlane.xlu0 %441
  %v443 = vmul.f32 %v442, 0.0061728396
  %v444 = vadd.f32 %v443, 1e-05
  %v445 = vrsqrt.pop %v444
  %v446 = vmul.f32 %v445, %v444
  %v447 = vmul.f32 %v446, %v445
  %v448 = vmul.f32 0.5, %v447
  %v449 = vsub.f32 1.5, %v448
  %v450 = vmul.f32 %v445, %v449
  %vm451 = vweird.f32 %v444
  %vm452 = vweird.f32 %v445
  %vm453 = vmor %vm451, %vm452
  %v454 = vsel %vm453, %v445, %v450
  %v455 = vmul.f32 %v26, %v454
  %v456 = vmul.f32 %v416, %v455
  %458 = vrot.lane.b32.xlu0 %v456, 1
  %v459 = vpop.permute.xlu0 %458
  %v461 = vsub.f32 %v26, %v459
  %463 = vset.pattern.permute.xlu0 1
  %464 = vperm.xlu0 %463, %v455
  %v465 = vpop.permute.xlu0 %464
  %v467 = vunpack.c.l.s4 839922192
  %v468 = vunpack.c.0.s8 %v467
  %v469 = vperm.slane %v465, %v468
  %v471 = vmul.f32 %v394, %v469
  %473 = vset.pattern.permute.xlu0 2
  %474 = vperm.xlu0 %473, %v461
  %v475 = vpop.permute.xlu0 %474
  %v477 = vunpack.c.l.s4 839922192
  %v478 = vunpack.c.0.s8 %v477
  %v479 = vperm.slane %v475, %v478
  %v481 = vadd.f32 %v471, %v479
  %v482 = vld [vmem:[%s3] sm:$0x77]
  %v483 = vmul.f32 %v482, %v469
  %v484 = vadd.f32 %v483, %v479
  %v487 = vrot.slane %v392, 4
  %v488 = vsel %vm427, %v220, %v487
  %v490 = vadd.f32 %v484, %v488
  %v491 = vadd.f32 %v490, %v481
  %v492 = vadd.f32 %v481, %v484
  %v493 = vadd.f32 %v492, %v484
  %v494 = vsub.f32 %v493, %v488
  %v495 = vld [vmem:[%s5] sm:$0xff]
  %v496 = vld [vmem:[%s5 + $0x8] sm:$0xff]
  %v497 = vld [vmem:[%s5 + $0x10] sm:$0xff]
  %v498 = vld [vmem:[%s5 + $0x18] sm:$0xff]
  %v499 = vld [vmem:[%s5 + $0x20] sm:$0xff]
  %v500 = vld [vmem:[%s5 + $0x28] sm:$0xff]
  %v501 = vld [vmem:[%s5 + $0x30] sm:$0xff]
  %v502 = vld [vmem:[%s5 + $0x38] sm:$0xff]
  %v503 = vld [vmem:[%s5 + $0x40] sm:$0xff]
  %v504 = vld [vmem:[%s5 + $0x48] sm:$0xff]
  %v505 = vld [vmem:[%s5 + $0x50] sm:$0xff]
  %v506 = vld [vmem:[%s5 + $0x58] sm:$0xff]
  %v507 = vld [vmem:[%s5 + $0x60] sm:$0xff]
  %v508 = vld [vmem:[%s5 + $0x68] sm:$0xff]
  %v509 = vld [vmem:[%s5 + $0x70] sm:$0xff]
  %v510 = vld [vmem:[%s5 + $0x78] sm:$0xff]
  %v511 = vld [vmem:[%s5 + $0x80] sm:$0xff]
  %v512 = vld [vmem:[%s5 + $0x88] sm:$0xff]
  %v513 = vld [vmem:[%s5 + $0x90] sm:$0xff]
  %v514 = vld [vmem:[%s5 + $0x98] sm:$0xff]
  %v515 = vld [vmem:[%s5 + $0xa0] sm:$0xff]
  %v516 = vld [vmem:[%s5 + $0xa8] sm:$0xff]
  %v517 = vld [vmem:[%s5 + $0xb0] sm:$0xff]
  %v518 = vld [vmem:[%s5 + $0xb8] sm:$0xff]
  %v519 = vld [vmem:[%s5 + $0xc0] sm:$0xff]
  %v520 = vld [vmem:[%s5 + $0xc8] sm:$0xff]
  %v521 = vld [vmem:[%s5 + $0xd0] sm:$0xff]
  %v522 = vld [vmem:[%s5 + $0xd8] sm:$0xff]
  %v523 = vld [vmem:[%s5 + $0xe0] sm:$0xff]
  %v524 = vld [vmem:[%s5 + $0xe8] sm:$0xff]
  %v525 = vld [vmem:[%s5 + $0xf0] sm:$0xff]
  %v526 = vld [vmem:[%s5 + $0xf8] sm:$0xff]
  %v527 = vld [vmem:[%s5 + $0x100] sm:$0xff]
  %v528 = vld [vmem:[%s5 + $0x108] sm:$0xff]
  %v529 = vld [vmem:[%s5 + $0x110] sm:$0xff]
  %v530 = vld [vmem:[%s5 + $0x118] sm:$0xff]
  %v531 = vld [vmem:[%s5 + $0x120] sm:$0xff]
  %v532 = vld [vmem:[%s5 + $0x128] sm:$0xff]
  %v533 = vld [vmem:[%s5 + $0x130] sm:$0xff]
  %v534 = vld [vmem:[%s5 + $0x138] sm:$0xff]
  %v535 = vld [vmem:[%s5 + $0x140] sm:$0xff]
  %v536 = vld [vmem:[%s5 + $0x148] sm:$0xff]
  %v537 = vld [vmem:[%s5 + $0x150] sm:$0xff]
  %v538 = vld [vmem:[%s5 + $0x158] sm:$0xff]
  %v539 = vld [vmem:[%s5 + $0x160] sm:$0xff]
  %v540 = vld [vmem:[%s5 + $0x168] sm:$0xff]
  %v541 = vld [vmem:[%s5 + $0x170] sm:$0xff]
  %v542 = vld [vmem:[%s5 + $0x178] sm:$0xff]
  %v543 = vld [vmem:[%s5 + $0x180] sm:$0xff]
  %v544 = vld [vmem:[%s5 + $0x188] sm:$0xff]
  %v545 = vld [vmem:[%s5 + $0x190] sm:$0xff]
  %v546 = vld [vmem:[%s5 + $0x198] sm:$0xff]
  %v547 = vld [vmem:[%s5 + $0x1a0] sm:$0xff]
  %v548 = vld [vmem:[%s5 + $0x1a8] sm:$0xff]
  %v549 = vld [vmem:[%s5 + $0x1b0] sm:$0xff]
  %v550 = vld [vmem:[%s5 + $0x1b8] sm:$0xff]
  %v551 = vld [vmem:[%s5 + $0x1c0] sm:$0xff]
  %v552 = vld [vmem:[%s5 + $0x1c8] sm:$0xff]
  %v553 = vld [vmem:[%s5 + $0x1d0] sm:$0xff]
  %v554 = vld [vmem:[%s5 + $0x1d8] sm:$0xff]
  %v555 = vld [vmem:[%s5 + $0x1e0] sm:$0xff]
  %v556 = vld [vmem:[%s5 + $0x1e8] sm:$0xff]
  %v557 = vld [vmem:[%s5 + $0x1f0] sm:$0xff]
  %v558 = vld [vmem:[%s5 + $0x1f8] sm:$0xff]
  %v559 = vld [vmem:[%s5 + $0x200] sm:$0xff]
  %v560 = vld [vmem:[%s5 + $0x208] sm:$0xff]
  %v561 = vld [vmem:[%s5 + $0x210] sm:$0xff]
  %v562 = vld [vmem:[%s5 + $0x218] sm:$0xff]
  %v563 = vld [vmem:[%s5 + $0x220] sm:$0xff]
  %v564 = vld [vmem:[%s5 + $0x228] sm:$0xff]
  %v565 = vld [vmem:[%s5 + $0x230] sm:$0xff]
  %v566 = vld [vmem:[%s5 + $0x238] sm:$0xff]
  %v567 = vld [vmem:[%s5 + $0x240] sm:$0xff]
  %v568 = vld [vmem:[%s5 + $0x248] sm:$0xff]
  %v569 = vld [vmem:[%s5 + $0x250] sm:$0xff]
  %v570 = vld [vmem:[%s5 + $0x258] sm:$0xff]
  %v571 = vld [vmem:[%s5 + $0x260] sm:$0xff]
  %v572 = vld [vmem:[%s5 + $0x268] sm:$0xff]
  %v573 = vld [vmem:[%s5 + $0x270] sm:$0xff]
  %v574 = vld [vmem:[%s5 + $0x278] sm:$0xff]
  %v575 = vld [vmem:[%s5 + $0x280] sm:$0xff]
  %v576 = vld [vmem:[%s5 + $0x288] sm:$0xff]
  %v577 = vld [vmem:[%s5 + $0x290] sm:$0xff]
  %v578 = vld [vmem:[%s5 + $0x298] sm:$0xff]
  %v579 = vld [vmem:[%s5 + $0x2a0] sm:$0xff]
  %v580 = vld [vmem:[%s5 + $0x2a8] sm:$0xff]
  %v581 = vld [vmem:[%s5 + $0x2b0] sm:$0xff]
  %v582 = vld [vmem:[%s5 + $0x2b8] sm:$0xff]
  %v583 = vld [vmem:[%s5 + $0x2c0] sm:$0xff]
  %v584 = vld [vmem:[%s5 + $0x2c8] sm:$0xff]
  %v585 = vld [vmem:[%s5 + $0x2d0] sm:$0xff]
  %v586 = vld [vmem:[%s5 + $0x2d8] sm:$0xff]
  %v587 = vld [vmem:[%s5 + $0x2e0] sm:$0xff]
  %v588 = vld [vmem:[%s5 + $0x2e8] sm:$0xff]
  %v589 = vld [vmem:[%s5 + $0x2f0] sm:$0xff]
  %v590 = vld [vmem:[%s5 + $0x2f8] sm:$0xff]
  %v591 = vld [vmem:[%s6] sm:$0x7]
  %v593 = vperm.slane %v591, 0
  %v594 = vperm.slane %v591, 1
  %v595 = vperm.slane %v591, 2
  %600 = vst [vmem:[#allocation1] ss:$2 sm:$0xff] %v491
  %v601 = vld.sshfl [vmem:[#allocation1] sm:$0xff pattern:$0x75316420]
  %v602 = vld.sshfl [vmem:[#allocation1 + $0x8] sm:$0xff pattern:$0x75316420]
  %v605 = vand.u32 %v540, 4294901760
  %606 = vmatpush.msra.mxu0 %v605
  %v607 = vand.u32 %v537, 4294901760
  %608 = vmatpush.msra.mxu0 %v607
  %v609 = vand.u32 %v534, 4294901760
  %610 = vmatpush.msra.mxu0 %v609
  %v611 = vand.u32 %v531, 4294901760
  %612 = vmatpush.msra.mxu0 %v611
  %v613 = vand.u32 %v528, 4294901760
  %614 = vmatpush.msra.mxu0 %v613
  %v615 = vand.u32 %v525, 4294901760
  %616 = vmatpush.msra.mxu0 %v615
  %v617 = vand.u32 %v522, 4294901760
  %618 = vmatpush.msra.mxu0 %v617
  %v619 = vand.u32 %v519, 4294901760
  %620 = vmatpush.msra.mxu0 %v619
  %v621 = vand.u32 %v516, 4294901760
  %622 = vmatpush.msra.mxu0 %v621
  %v623 = vand.u32 %v513, 4294901760
  %624 = vmatpush.msra.mxu0 %v623
  %v625 = vand.u32 %v510, 4294901760
  %626 = vmatpush.msra.mxu0 %v625
  %v627 = vand.u32 %v507, 4294901760
  %628 = vmatpush.msra.mxu0 %v627
  %v629 = vand.u32 %v504, 4294901760
  %630 = vmatpush.msra.mxu0 %v629
  %v631 = vand.u32 %v501, 4294901760
  %632 = vmatpush.msra.mxu0 %v631
  %v633 = vand.u32 %v498, 4294901760
  %634 = vmatpush.msra.mxu0 %v633
  %v635 = vand.u32 %v495, 4294901760
  %636 = vmatpush.msra.mxu0 %v635
  %v637 = vand.u32 %v601, 4294901760
  %v638 = vsub.f32 %v601, %v637
  %v639 = vand.u32 %v638, 4294901760
  %v640 = vsub.f32 %v638, %v639
  %v641 = vand.u32 %v640, 4294901760
  %642 = vmatmul.f32.gmra.mxu0 %v641
  %v643 = vpop.f32.mrf.mxu0
  %v644 = vadd.f32 %v593, %v643
  %645 = vdwg.mxu0
  %v646 = vand.u32 %v540, 4294901760
  %v647 = vsub.f32 %v540, %v646
  %v648 = vand.u32 %v647, 4294901760
  %v649 = vsub.f32 %v647, %v648
  %v650 = vand.u32 %v649, 4294901760
  %651 = vmatpush.msra.mxu0 %v650
  %v652 = vand.u32 %v537, 4294901760
  %v653 = vsub.f32 %v537, %v652
  %v654 = vand.u32 %v653, 4294901760
  %v655 = vsub.f32 %v653, %v654
  %v656 = vand.u32 %v655, 4294901760
  %657 = vmatpush.msra.mxu0 %v656
  %v658 = vand.u32 %v534, 4294901760
  %v659 = vsub.f32 %v534, %v658
  %v660 = vand.u32 %v659, 4294901760
  %v661 = vsub.f32 %v659, %v660
  %v662 = vand.u32 %v661, 4294901760
  %663 = vmatpush.msra.mxu0 %v662
  %v664 = vand.u32 %v531, 4294901760
  %v665 = vsub.f32 %v531, %v664
  %v666 = vand.u32 %v665, 4294901760
  %v667 = vsub.f32 %v665, %v666
  %v668 = vand.u32 %v667, 4294901760
  %669 = vmatpush.msra.mxu0 %v668
  %v670 = vand.u32 %v528, 4294901760
  %v671 = vsub.f32 %v528, %v670
  %v672 = vand.u32 %v671, 4294901760
  %v673 = vsub.f32 %v671, %v672
  %v674 = vand.u32 %v673, 4294901760
  %675 = vmatpush.msra.mxu0 %v674
  %v676 = vand.u32 %v525, 4294901760
  %v677 = vsub.f32 %v525, %v676
  %v678 = vand.u32 %v677, 4294901760
  %v679 = vsub.f32 %v677, %v678
  %v680 = vand.u32 %v679, 4294901760
  %681 = vmatpush.msra.mxu0 %v680
  %v682 = vand.u32 %v522, 4294901760
  %v683 = vsub.f32 %v522, %v682
  %v684 = vand.u32 %v683, 4294901760
  %v685 = vsub.f32 %v683, %v684
  %v686 = vand.u32 %v685, 4294901760
  %687 = vmatpush.msra.mxu0 %v686
  %v688 = vand.u32 %v519, 4294901760
  %v689 = vsub.f32 %v519, %v688
  %v690 = vand.u32 %v689, 4294901760
  %v691 = vsub.f32 %v689, %v690
  %v692 = vand.u32 %v691, 4294901760
  %693 = vmatpush.msra.mxu0 %v692
  %v694 = vand.u32 %v516, 4294901760
  %v695 = vsub.f32 %v516, %v694
  %v696 = vand.u32 %v695, 4294901760
  %v697 = vsub.f32 %v695, %v696
  %v698 = vand.u32 %v697, 4294901760
  %699 = vmatpush.msra.mxu0 %v698
  %v700 = vand.u32 %v513, 4294901760
  %v701 = vsub.f32 %v513, %v700
  %v702 = vand.u32 %v701, 4294901760
  %v703 = vsub.f32 %v701, %v702
  %v704 = vand.u32 %v703, 4294901760
  %705 = vmatpush.msra.mxu0 %v704
  %v706 = vand.u32 %v510, 4294901760
  %v707 = vsub.f32 %v510, %v706
  %v708 = vand.u32 %v707, 4294901760
  %v709 = vsub.f32 %v707, %v708
  %v710 = vand.u32 %v709, 4294901760
  %711 = vmatpush.msra.mxu0 %v710
  %v712 = vand.u32 %v507, 4294901760
  %v713 = vsub.f32 %v507, %v712
  %v714 = vand.u32 %v713, 4294901760
  %v715 = vsub.f32 %v713, %v714
  %v716 = vand.u32 %v715, 4294901760
  %717 = vmatpush.msra.mxu0 %v716
  %v718 = vand.u32 %v504, 4294901760
  %v719 = vsub.f32 %v504, %v718
  %v720 = vand.u32 %v719, 4294901760
  %v721 = vsub.f32 %v719, %v720
  %v722 = vand.u32 %v721, 4294901760
  %723 = vmatpush.msra.mxu0 %v722
  %v724 = vand.u32 %v501, 4294901760
  %v725 = vsub.f32 %v501, %v724
  %v726 = vand.u32 %v725, 4294901760
  %v727 = vsub.f32 %v725, %v726
  %v728 = vand.u32 %v727, 4294901760
  %729 = vmatpush.msra.mxu0 %v728
  %v730 = vand.u32 %v498, 4294901760
  %v731 = vsub.f32 %v498, %v730
  %v732 = vand.u32 %v731, 4294901760
  %v733 = vsub.f32 %v731, %v732
  %v734 = vand.u32 %v733, 4294901760
  %735 = vmatpush.msra.mxu0 %v734
  %v736 = vand.u32 %v495, 4294901760
  %v737 = vsub.f32 %v495, %v736
  %v738 = vand.u32 %v737, 4294901760
  %v739 = vsub.f32 %v737, %v738
  %v740 = vand.u32 %v739, 4294901760
  %741 = vmatpush.msra.mxu0 %v740
  %v742 = vand.u32 %v601, 4294901760
  %743 = vmatmul.f32.gmra.mxu0 %v742
  %v744 = vpop.f32.mrf.mxu0
  %v745 = vadd.f32 %v644, %v744
  %746 = vdwg.mxu0
  %v747 = vand.u32 %v540, 4294901760
  %v748 = vsub.f32 %v540, %v747
  %749 = vmatpush.msra.mxu0 %v748
  %v750 = vand.u32 %v537, 4294901760
  %v751 = vsub.f32 %v537, %v750
  %752 = vmatpush.msra.mxu0 %v751
  %v753 = vand.u32 %v534, 4294901760
  %v754 = vsub.f32 %v534, %v753
  %755 = vmatpush.msra.mxu0 %v754
  %v756 = vand.u32 %v531, 4294901760
  %v757 = vsub.f32 %v531, %v756
  %758 = vmatpush.msra.mxu0 %v757
  %v759 = vand.u32 %v528, 4294901760
  %v760 = vsub.f32 %v528, %v759
  %761 = vmatpush.msra.mxu0 %v760
  %v762 = vand.u32 %v525, 4294901760
  %v763 = vsub.f32 %v525, %v762
  %764 = vmatpush.msra.mxu0 %v763
  %v765 = vand.u32 %v522, 4294901760
  %v766 = vsub.f32 %v522, %v765
  %767 = vmatpush.msra.mxu0 %v766
  %v768 = vand.u32 %v519, 4294901760
  %v769 = vsub.f32 %v519, %v768
  %770 = vmatpush.msra.mxu0 %v769
  %v771 = vand.u32 %v516, 4294901760
  %v772 = vsub.f32 %v516, %v771
  %773 = vmatpush.msra.mxu0 %v772
  %v774 = vand.u32 %v513, 4294901760
  %v775 = vsub.f32 %v513, %v774
  %776 = vmatpush.msra.mxu0 %v775
  %v777 = vand.u32 %v510, 4294901760
  %v778 = vsub.f32 %v510, %v777
  %779 = vmatpush.msra.mxu0 %v778
  %v780 = vand.u32 %v507, 4294901760
  %v781 = vsub.f32 %v507, %v780
  %782 = vmatpush.msra.mxu0 %v781
  %v783 = vand.u32 %v504, 4294901760
  %v784 = vsub.f32 %v504, %v783
  %785 = vmatpush.msra.mxu0 %v784
  %v786 = vand.u32 %v501, 4294901760
  %v787 = vsub.f32 %v501, %v786
  %788 = vmatpush.msra.mxu0 %v787
  %v789 = vand.u32 %v498, 4294901760
  %v790 = vsub.f32 %v498, %v789
  %791 = vmatpush.msra.mxu0 %v790
  %v792 = vand.u32 %v495, 4294901760
  %v793 = vsub.f32 %v495, %v792
  %794 = vmatpush.msra.mxu0 %v793
  %v795 = vand.u32 %v601, 4294901760
  %v796 = vsub.f32 %v601, %v795
  %797 = vmatmul.f32.gmra.mxu0 %v796
  %v798 = vpop.f32.mrf.mxu0
  %v799 = vadd.f32 %v745, %v798
  %800 = vdwg.mxu0
  %v801 = vand.u32 %v540, 4294901760
  %802 = vmatpush.msra.mxu0 %v801
  %v803 = vand.u32 %v537, 4294901760
  %804 = vmatpush.msra.mxu0 %v803
  %v805 = vand.u32 %v534, 4294901760
  %806 = vmatpush.msra.mxu0 %v805
  %v807 = vand.u32 %v531, 4294901760
  %808 = vmatpush.msra.mxu0 %v807
  %v809 = vand.u32 %v528, 4294901760
  %810 = vmatpush.msra.mxu0 %v809
  %v811 = vand.u32 %v525, 4294901760
  %812 = vmatpush.msra.mxu0 %v811
  %v813 = vand.u32 %v522, 4294901760
  %814 = vmatpush.msra.mxu0 %v813
  %v815 = vand.u32 %v519, 4294901760
  %816 = vmatpush.msra.mxu0 %v815
  %v817 = vand.u32 %v516, 4294901760
  %818 = vmatpush.msra.mxu0 %v817
  %v819 = vand.u32 %v513, 4294901760
  %820 = vmatpush.msra.mxu0 %v819
  %v821 = vand.u32 %v510, 4294901760
  %822 = vmatpush.msra.mxu0 %v821
  %v823 = vand.u32 %v507, 4294901760
  %824 = vmatpush.msra.mxu0 %v823
  %v825 = vand.u32 %v504, 4294901760
  %826 = vmatpush.msra.mxu0 %v825
  %v827 = vand.u32 %v501, 4294901760
  %828 = vmatpush.msra.mxu0 %v827
  %v829 = vand.u32 %v498, 4294901760
  %830 = vmatpush.msra.mxu0 %v829
  %v831 = vand.u32 %v495, 4294901760
  %832 = vmatpush.msra.mxu0 %v831
  %v833 = vand.u32 %v601, 4294901760
  %v834 = vsub.f32 %v601, %v833
  %v835 = vand.u32 %v834, 4294901760
  %836 = vmatmul.f32.gmra.mxu0 %v835
  %v837 = vpop.f32.mrf.mxu0
  %v838 = vadd.f32 %v799, %v837
  %839 = vdwg.mxu0
  %v840 = vand.u32 %v540, 4294901760
  %v841 = vsub.f32 %v540, %v840
  %v842 = vand.u32 %v841, 4294901760
  %843 = vmatpush.msra.mxu0 %v842
  %v844 = vand.u32 %v537, 4294901760
  %v845 = vsub.f32 %v537, %v844
  %v846 = vand.u32 %v845, 4294901760
  %847 = vmatpush.msra.mxu0 %v846
  %v848 = vand.u32 %v534, 4294901760
  %v849 = vsub.f32 %v534, %v848
  %v850 = vand.u32 %v849, 4294901760
  %851 = vmatpush.msra.mxu0 %v850
  %v852 = vand.u32 %v531, 4294901760
  %v853 = vsub.f32 %v531, %v852
  %v854 = vand.u32 %v853, 4294901760
  %855 = vmatpush.msra.mxu0 %v854
  %v856 = vand.u32 %v528, 4294901760
  %v857 = vsub.f32 %v528, %v856
  %v858 = vand.u32 %v857, 4294901760
  %859 = vmatpush.msra.mxu0 %v858
  %v860 = vand.u32 %v525, 4294901760
  %v861 = vsub.f32 %v525, %v860
  %v862 = vand.u32 %v861, 4294901760
  %863 = vmatpush.msra.mxu0 %v862
  %v864 = vand.u32 %v522, 4294901760
  %v865 = vsub.f32 %v522, %v864
  %v866 = vand.u32 %v865, 4294901760
  %867 = vmatpush.msra.mxu0 %v866
  %v868 = vand.u32 %v519, 4294901760
  %v869 = vsub.f32 %v519, %v868
  %v870 = vand.u32 %v869, 4294901760
  %871 = vmatpush.msra.mxu0 %v870
  %v872 = vand.u32 %v516, 4294901760
  %v873 = vsub.f32 %v516, %v872
  %v874 = vand.u32 %v873, 4294901760
  %875 = vmatpush.msra.mxu0 %v874
  %v876 = vand.u32 %v513, 4294901760
  %v877 = vsub.f32 %v513, %v876
  %v878 = vand.u32 %v877, 4294901760
  %879 = vmatpush.msra.mxu0 %v878
  %v880 = vand.u32 %v510, 4294901760
  %v881 = vsub.f32 %v510, %v880
  %v882 = vand.u32 %v881, 4294901760
  %883 = vmatpush.msra.mxu0 %v882
  %v884 = vand.u32 %v507, 4294901760
  %v885 = vsub.f32 %v507, %v884
  %v886 = vand.u32 %v885, 4294901760
  %887 = vmatpush.msra.mxu0 %v886
  %v888 = vand.u32 %v504, 4294901760
  %v889 = vsub.f32 %v504, %v888
  %v890 = vand.u32 %v889, 4294901760
  %891 = vmatpush.msra.mxu0 %v890
  %v892 = vand.u32 %v501, 4294901760
  %v893 = vsub.f32 %v501, %v892
  %v894 = vand.u32 %v893, 4294901760
  %895 = vmatpush.msra.mxu0 %v894
  %v896 = vand.u32 %v498, 4294901760
  %v897 = vsub.f32 %v498, %v896
  %v898 = vand.u32 %v897, 4294901760
  %899 = vmatpush.msra.mxu0 %v898
  %v900 = vand.u32 %v495, 4294901760
  %v901 = vsub.f32 %v495, %v900
  %v902 = vand.u32 %v901, 4294901760
  %903 = vmatpush.msra.mxu0 %v902
  %v904 = vand.u32 %v601, 4294901760
  %905 = vmatmul.f32.gmra.mxu0 %v904
  %v906 = vpop.f32.mrf.mxu0
  %v907 = vadd.f32 %v838, %v906
  %908 = vdwg.mxu0
  %v909 = vand.u32 %v540, 4294901760
  %910 = vmatpush.msra.mxu0 %v909
  %v911 = vand.u32 %v537, 4294901760
  %912 = vmatpush.msra.mxu0 %v911
  %v913 = vand.u32 %v534, 4294901760
  %914 = vmatpush.msra.mxu0 %v913
  %v915 = vand.u32 %v531, 4294901760
  %916 = vmatpush.msra.mxu0 %v915
  %v917 = vand.u32 %v528, 4294901760
  %918 = vmatpush.msra.mxu0 %v917
  %v919 = vand.u32 %v525, 4294901760
  %920 = vmatpush.msra.mxu0 %v919
  %v921 = vand.u32 %v522, 4294901760
  %922 = vmatpush.msra.mxu0 %v921
  %v923 = vand.u32 %v519, 4294901760
  %924 = vmatpush.msra.mxu0 %v923
  %v925 = vand.u32 %v516, 4294901760
  %926 = vmatpush.msra.mxu0 %v925
  %v927 = vand.u32 %v513, 4294901760
  %928 = vmatpush.msra.mxu0 %v927
  %v929 = vand.u32 %v510, 4294901760
  %930 = vmatpush.msra.mxu0 %v929
  %v931 = vand.u32 %v507, 4294901760
  %932 = vmatpush.msra.mxu0 %v931
  %v933 = vand.u32 %v504, 4294901760
  %934 = vmatpush.msra.mxu0 %v933
  %v935 = vand.u32 %v501, 4294901760
  %936 = vmatpush.msra.mxu0 %v935
  %v937 = vand.u32 %v498, 4294901760
  %938 = vmatpush.msra.mxu0 %v937
  %v939 = vand.u32 %v495, 4294901760
  %940 = vmatpush.msra.mxu0 %v939
  %v941 = vand.u32 %v601, 4294901760
  %942 = vmatmul.f32.gmra.mxu0 %v941
  %v943 = vpop.f32.mrf.mxu0
  %v944 = vadd.f32 %v907, %v943
  %945 = vdwg.mxu0
  %v946 = vand.u32 %v588, 4294901760
  %947 = vmatpush.msra.mxu0 %v946
  %v948 = vand.u32 %v585, 4294901760
  %949 = vmatpush.msra.mxu0 %v948
  %v950 = vand.u32 %v582, 4294901760
  %951 = vmatpush.msra.mxu0 %v950
  %v952 = vand.u32 %v579, 4294901760
  %953 = vmatpush.msra.mxu0 %v952
  %v954 = vand.u32 %v576, 4294901760
  %955 = vmatpush.msra.mxu0 %v954
  %v956 = vand.u32 %v573, 4294901760
  %957 = vmatpush.msra.mxu0 %v956
  %v958 = vand.u32 %v570, 4294901760
  %959 = vmatpush.msra.mxu0 %v958
  %v960 = vand.u32 %v567, 4294901760
  %961 = vmatpush.msra.mxu0 %v960
  %v962 = vand.u32 %v564, 4294901760
  %963 = vmatpush.msra.mxu0 %v962
  %v964 = vand.u32 %v561, 4294901760
  %965 = vmatpush.msra.mxu0 %v964
  %v966 = vand.u32 %v558, 4294901760
  %967 = vmatpush.msra.mxu0 %v966
  %v968 = vand.u32 %v555, 4294901760
  %969 = vmatpush.msra.mxu0 %v968
  %v970 = vand.u32 %v552, 4294901760
  %971 = vmatpush.msra.mxu0 %v970
  %v972 = vand.u32 %v549, 4294901760
  %973 = vmatpush.msra.mxu0 %v972
  %v974 = vand.u32 %v546, 4294901760
  %975 = vmatpush.msra.mxu0 %v974
  %v976 = vand.u32 %v543, 4294901760
  %977 = vmatpush.msra.mxu0 %v976
  %v978 = vand.u32 %v602, 4294901760
  %v979 = vsub.f32 %v602, %v978
  %v980 = vand.u32 %v979, 4294901760
  %v981 = vsub.f32 %v979, %v980
  %v982 = vand.u32 %v981, 4294901760
  %983 = vmatmul.f32.gmra.mxu0 %v982
  %v984 = vpop.f32.mrf.mxu0
  %v985 = vadd.f32 %v944, %v984
  %986 = vdwg.mxu0
  %v987 = vand.u32 %v588, 4294901760
  %v988 = vsub.f32 %v588, %v987
  %v989 = vand.u32 %v988, 4294901760
  %v990 = vsub.f32 %v988, %v989
  %v991 = vand.u32 %v990, 4294901760
  %992 = vmatpush.msra.mxu0 %v991
  %v993 = vand.u32 %v585, 4294901760
  %v994 = vsub.f32 %v585, %v993
  %v995 = vand.u32 %v994, 4294901760
  %v996 = vsub.f32 %v994, %v995
  %v997 = vand.u32 %v996, 4294901760
  %998 = vmatpush.msra.mxu0 %v997
  %v999 = vand.u32 %v582, 4294901760
  %v1000 = vsub.f32 %v582, %v999
  %v1001 = vand.u32 %v1000, 4294901760
  %v1002 = vsub.f32 %v1000, %v1001
  %v1003 = vand.u32 %v1002, 4294901760
  %1004 = vmatpush.msra.mxu0 %v1003
  %v1005 = vand.u32 %v579, 4294901760
  %v1006 = vsub.f32 %v579, %v1005
  %v1007 = vand.u32 %v1006, 4294901760
  %v1008 = vsub.f32 %v1006, %v1007
  %v1009 = vand.u32 %v1008, 4294901760
  %1010 = vmatpush.msra.mxu0 %v1009
  %v1011 = vand.u32 %v576, 4294901760
  %v1012 = vsub.f32 %v576, %v1011
  %v1013 = vand.u32 %v1012, 4294901760
  %v1014 = vsub.f32 %v1012, %v1013
  %v1015 = vand.u32 %v1014, 4294901760
  %1016 = vmatpush.msra.mxu0 %v1015
  %v1017 = vand.u32 %v573, 4294901760
  %v1018 = vsub.f32 %v573, %v1017
  %v1019 = vand.u32 %v1018, 4294901760
  %v1020 = vsub.f32 %v1018, %v1019
  %v1021 = vand.u32 %v1020, 4294901760
  %1022 = vmatpush.msra.mxu0 %v1021
  %v1023 = vand.u32 %v570, 4294901760
  %v1024 = vsub.f32 %v570, %v1023
  %v1025 = vand.u32 %v1024, 4294901760
  %v1026 = vsub.f32 %v1024, %v1025
  %v1027 = vand.u32 %v1026, 4294901760
  %1028 = vmatpush.msra.mxu0 %v1027
  %v1029 = vand.u32 %v567, 4294901760
  %v1030 = vsub.f32 %v567, %v1029
  %v1031 = vand.u32 %v1030, 4294901760
  %v1032 = vsub.f32 %v1030, %v1031
  %v1033 = vand.u32 %v1032, 4294901760
  %1034 = vmatpush.msra.mxu0 %v1033
  %v1035 = vand.u32 %v564, 4294901760
  %v1036 = vsub.f32 %v564, %v1035
  %v1037 = vand.u32 %v1036, 4294901760
  %v1038 = vsub.f32 %v1036, %v1037
  %v1039 = vand.u32 %v1038, 4294901760
  %1040 = vmatpush.msra.mxu0 %v1039
  %v1041 = vand.u32 %v561, 4294901760
  %v1042 = vsub.f32 %v561, %v1041
  %v1043 = vand.u32 %v1042, 4294901760
  %v1044 = vsub.f32 %v1042, %v1043
  %v1045 = vand.u32 %v1044, 4294901760
  %1046 = vmatpush.msra.mxu0 %v1045
  %v1047 = vand.u32 %v558, 4294901760
  %v1048 = vsub.f32 %v558, %v1047
  %v1049 = vand.u32 %v1048, 4294901760
  %v1050 = vsub.f32 %v1048, %v1049
  %v1051 = vand.u32 %v1050, 4294901760
  %1052 = vmatpush.msra.mxu0 %v1051
  %v1053 = vand.u32 %v555, 4294901760
  %v1054 = vsub.f32 %v555, %v1053
  %v1055 = vand.u32 %v1054, 4294901760
  %v1056 = vsub.f32 %v1054, %v1055
  %v1057 = vand.u32 %v1056, 4294901760
  %1058 = vmatpush.msra.mxu0 %v1057
  %v1059 = vand.u32 %v552, 4294901760
  %v1060 = vsub.f32 %v552, %v1059
  %v1061 = vand.u32 %v1060, 4294901760
  %v1062 = vsub.f32 %v1060, %v1061
  %v1063 = vand.u32 %v1062, 4294901760
  %1064 = vmatpush.msra.mxu0 %v1063
  %v1065 = vand.u32 %v549, 4294901760
  %v1066 = vsub.f32 %v549, %v1065
  %v1067 = vand.u32 %v1066, 4294901760
  %v1068 = vsub.f32 %v1066, %v1067
  %v1069 = vand.u32 %v1068, 4294901760
  %1070 = vmatpush.msra.mxu0 %v1069
  %v1071 = vand.u32 %v546, 4294901760
  %v1072 = vsub.f32 %v546, %v1071
  %v1073 = vand.u32 %v1072, 4294901760
  %v1074 = vsub.f32 %v1072, %v1073
  %v1075 = vand.u32 %v1074, 4294901760
  %1076 = vmatpush.msra.mxu0 %v1075
  %v1077 = vand.u32 %v543, 4294901760
  %v1078 = vsub.f32 %v543, %v1077
  %v1079 = vand.u32 %v1078, 4294901760
  %v1080 = vsub.f32 %v1078, %v1079
  %v1081 = vand.u32 %v1080, 4294901760
  %1082 = vmatpush.msra.mxu0 %v1081
  %v1083 = vand.u32 %v602, 4294901760
  %1084 = vmatmul.f32.gmra.mxu0 %v1083
  %v1085 = vpop.f32.mrf.mxu0
  %v1086 = vadd.f32 %v985, %v1085
  %1087 = vdwg.mxu0
  %v1088 = vand.u32 %v588, 4294901760
  %v1089 = vsub.f32 %v588, %v1088
  %1090 = vmatpush.msra.mxu0 %v1089
  %v1091 = vand.u32 %v585, 4294901760
  %v1092 = vsub.f32 %v585, %v1091
  %1093 = vmatpush.msra.mxu0 %v1092
  %v1094 = vand.u32 %v582, 4294901760
  %v1095 = vsub.f32 %v582, %v1094
  %1096 = vmatpush.msra.mxu0 %v1095
  %v1097 = vand.u32 %v579, 4294901760
  %v1098 = vsub.f32 %v579, %v1097
  %1099 = vmatpush.msra.mxu0 %v1098
  %v1100 = vand.u32 %v576, 4294901760
  %v1101 = vsub.f32 %v576, %v1100
  %1102 = vmatpush.msra.mxu0 %v1101
  %v1103 = vand.u32 %v573, 4294901760
  %v1104 = vsub.f32 %v573, %v1103
  %1105 = vmatpush.msra.mxu0 %v1104
  %v1106 = vand.u32 %v570, 4294901760
  %v1107 = vsub.f32 %v570, %v1106
  %1108 = vmatpush.msra.mxu0 %v1107
  %v1109 = vand.u32 %v567, 4294901760
  %v1110 = vsub.f32 %v567, %v1109
  %1111 = vmatpush.msra.mxu0 %v1110
  %v1112 = vand.u32 %v564, 4294901760
  %v1113 = vsub.f32 %v564, %v1112
  %1114 = vmatpush.msra.mxu0 %v1113
  %v1115 = vand.u32 %v561, 4294901760
  %v1116 = vsub.f32 %v561, %v1115
  %1117 = vmatpush.msra.mxu0 %v1116
  %v1118 = vand.u32 %v558, 4294901760
  %v1119 = vsub.f32 %v558, %v1118
  %1120 = vmatpush.msra.mxu0 %v1119
  %v1121 = vand.u32 %v555, 4294901760
  %v1122 = vsub.f32 %v555, %v1121
  %1123 = vmatpush.msra.mxu0 %v1122
  %v1124 = vand.u32 %v552, 4294901760
  %v1125 = vsub.f32 %v552, %v1124
  %1126 = vmatpush.msra.mxu0 %v1125
  %v1127 = vand.u32 %v549, 4294901760
  %v1128 = vsub.f32 %v549, %v1127
  %1129 = vmatpush.msra.mxu0 %v1128
  %v1130 = vand.u32 %v546, 4294901760
  %v1131 = vsub.f32 %v546, %v1130
  %1132 = vmatpush.msra.mxu0 %v1131
  %v1133 = vand.u32 %v543, 4294901760
  %v1134 = vsub.f32 %v543, %v1133
  %1135 = vmatpush.msra.mxu0 %v1134
  %v1136 = vand.u32 %v602, 4294901760
  %v1137 = vsub.f32 %v602, %v1136
  %1138 = vmatmul.f32.gmra.mxu0 %v1137
  %v1139 = vpop.f32.mrf.mxu0
  %v1140 = vadd.f32 %v1086, %v1139
  %1141 = vdwg.mxu0
  %v1142 = vand.u32 %v588, 4294901760
  %1143 = vmatpush.msra.mxu0 %v1142
  %v1144 = vand.u32 %v585, 4294901760
  %1145 = vmatpush.msra.mxu0 %v1144
  %v1146 = vand.u32 %v582, 4294901760
  %1147 = vmatpush.msra.mxu0 %v1146
  %v1148 = vand.u32 %v579, 4294901760
  %1149 = vmatpush.msra.mxu0 %v1148
  %v1150 = vand.u32 %v576, 4294901760
  %1151 = vmatpush.msra.mxu0 %v1150
  %v1152 = vand.u32 %v573, 4294901760
  %1153 = vmatpush.msra.mxu0 %v1152
  %v1154 = vand.u32 %v570, 4294901760
  %1155 = vmatpush.msra.mxu0 %v1154
  %v1156 = vand.u32 %v567, 4294901760
  %1157 = vmatpush.msra.mxu0 %v1156
  %v1158 = vand.u32 %v564, 4294901760
  %1159 = vmatpush.msra.mxu0 %v1158
  %v1160 = vand.u32 %v561, 4294901760
  %1161 = vmatpush.msra.mxu0 %v1160
  %v1162 = vand.u32 %v558, 4294901760
  %1163 = vmatpush.msra.mxu0 %v1162
  %v1164 = vand.u32 %v555, 4294901760
  %1165 = vmatpush.msra.mxu0 %v1164
  %v1166 = vand.u32 %v552, 4294901760
  %1167 = vmatpush.msra.mxu0 %v1166
  %v1168 = vand.u32 %v549, 4294901760
  %1169 = vmatpush.msra.mxu0 %v1168
  %v1170 = vand.u32 %v546, 4294901760
  %1171 = vmatpush.msra.mxu0 %v1170
  %v1172 = vand.u32 %v543, 4294901760
  %1173 = vmatpush.msra.mxu0 %v1172
  %v1174 = vand.u32 %v602, 4294901760
  %v1175 = vsub.f32 %v602, %v1174
  %v1176 = vand.u32 %v1175, 4294901760
  %1177 = vmatmul.f32.gmra.mxu0 %v1176
  %v1178 = vpop.f32.mrf.mxu0
  %v1179 = vadd.f32 %v1140, %v1178
  %1180 = vdwg.mxu0
  %v1181 = vand.u32 %v588, 4294901760
  %v1182 = vsub.f32 %v588, %v1181
  %v1183 = vand.u32 %v1182, 4294901760
  %1184 = vmatpush.msra.mxu0 %v1183
  %v1185 = vand.u32 %v585, 4294901760
  %v1186 = vsub.f32 %v585, %v1185
  %v1187 = vand.u32 %v1186, 4294901760
  %1188 = vmatpush.msra.mxu0 %v1187
  %v1189 = vand.u32 %v582, 4294901760
  %v1190 = vsub.f32 %v582, %v1189
  %v1191 = vand.u32 %v1190, 4294901760
  %1192 = vmatpush.msra.mxu0 %v1191
  %v1193 = vand.u32 %v579, 4294901760
  %v1194 = vsub.f32 %v579, %v1193
  %v1195 = vand.u32 %v1194, 4294901760
  %1196 = vmatpush.msra.mxu0 %v1195
  %v1197 = vand.u32 %v576, 4294901760
  %v1198 = vsub.f32 %v576, %v1197
  %v1199 = vand.u32 %v1198, 4294901760
  %1200 = vmatpush.msra.mxu0 %v1199
  %v1201 = vand.u32 %v573, 4294901760
  %v1202 = vsub.f32 %v573, %v1201
  %v1203 = vand.u32 %v1202, 4294901760
  %1204 = vmatpush.msra.mxu0 %v1203
  %v1205 = vand.u32 %v570, 4294901760
  %v1206 = vsub.f32 %v570, %v1205
  %v1207 = vand.u32 %v1206, 4294901760
  %1208 = vmatpush.msra.mxu0 %v1207
  %v1209 = vand.u32 %v567, 4294901760
  %v1210 = vsub.f32 %v567, %v1209
  %v1211 = vand.u32 %v1210, 4294901760
  %1212 = vmatpush.msra.mxu0 %v1211
  %v1213 = vand.u32 %v564, 4294901760
  %v1214 = vsub.f32 %v564, %v1213
  %v1215 = vand.u32 %v1214, 4294901760
  %1216 = vmatpush.msra.mxu0 %v1215
  %v1217 = vand.u32 %v561, 4294901760
  %v1218 = vsub.f32 %v561, %v1217
  %v1219 = vand.u32 %v1218, 4294901760
  %1220 = vmatpush.msra.mxu0 %v1219
  %v1221 = vand.u32 %v558, 4294901760
  %v1222 = vsub.f32 %v558, %v1221
  %v1223 = vand.u32 %v1222, 4294901760
  %1224 = vmatpush.msra.mxu0 %v1223
  %v1225 = vand.u32 %v555, 4294901760
  %v1226 = vsub.f32 %v555, %v1225
  %v1227 = vand.u32 %v1226, 4294901760
  %1228 = vmatpush.msra.mxu0 %v1227
  %v1229 = vand.u32 %v552, 4294901760
  %v1230 = vsub.f32 %v552, %v1229
  %v1231 = vand.u32 %v1230, 4294901760
  %1232 = vmatpush.msra.mxu0 %v1231
  %v1233 = vand.u32 %v549, 4294901760
  %v1234 = vsub.f32 %v549, %v1233
  %v1235 = vand.u32 %v1234, 4294901760
  %1236 = vmatpush.msra.mxu0 %v1235
  %v1237 = vand.u32 %v546, 4294901760
  %v1238 = vsub.f32 %v546, %v1237
  %v1239 = vand.u32 %v1238, 4294901760
  %1240 = vmatpush.msra.mxu0 %v1239
  %v1241 = vand.u32 %v543, 4294901760
  %v1242 = vsub.f32 %v543, %v1241
  %v1243 = vand.u32 %v1242, 4294901760
  %1244 = vmatpush.msra.mxu0 %v1243
  %v1245 = vand.u32 %v602, 4294901760
  %1246 = vmatmul.f32.gmra.mxu0 %v1245
  %v1247 = vpop.f32.mrf.mxu0
  %v1248 = vadd.f32 %v1179, %v1247
  %1249 = vdwg.mxu0
  %v1250 = vand.u32 %v588, 4294901760
  %1251 = vmatpush.msra.mxu0 %v1250
  %v1252 = vand.u32 %v585, 4294901760
  %1253 = vmatpush.msra.mxu0 %v1252
  %v1254 = vand.u32 %v582, 4294901760
  %1255 = vmatpush.msra.mxu0 %v1254
  %v1256 = vand.u32 %v579, 4294901760
  %1257 = vmatpush.msra.mxu0 %v1256
  %v1258 = vand.u32 %v576, 4294901760
  %1259 = vmatpush.msra.mxu0 %v1258
  %v1260 = vand.u32 %v573, 4294901760
  %1261 = vmatpush.msra.mxu0 %v1260
  %v1262 = vand.u32 %v570, 4294901760
  %1263 = vmatpush.msra.mxu0 %v1262
  %v1264 = vand.u32 %v567, 4294901760
  %1265 = vmatpush.msra.mxu0 %v1264
  %v1266 = vand.u32 %v564, 4294901760
  %1267 = vmatpush.msra.mxu0 %v1266
  %v1268 = vand.u32 %v561, 4294901760
  %1269 = vmatpush.msra.mxu0 %v1268
  %v1270 = vand.u32 %v558, 4294901760
  %1271 = vmatpush.msra.mxu0 %v1270
  %v1272 = vand.u32 %v555, 4294901760
  %1273 = vmatpush.msra.mxu0 %v1272
  %v1274 = vand.u32 %v552, 4294901760
  %1275 = vmatpush.msra.mxu0 %v1274
  %v1276 = vand.u32 %v549, 4294901760
  %1277 = vmatpush.msra.mxu0 %v1276
  %v1278 = vand.u32 %v546, 4294901760
  %1279 = vmatpush.msra.mxu0 %v1278
  %v1280 = vand.u32 %v543, 4294901760
  %1281 = vmatpush.msra.mxu0 %v1280
  %v1282 = vand.u32 %v602, 4294901760
  %1283 = vmatmul.f32.gmra.mxu0 %v1282
  %v1284 = vpop.f32.mrf.mxu0
  %v1285 = vadd.f32 %v1248, %v1284
  %1286 = vdwg.mxu0
  %v1287 = vand.u32 %v541, 4294901760
  %1288 = vmatpush.msra.mxu0 %v1287
  %v1289 = vand.u32 %v538, 4294901760
  %1290 = vmatpush.msra.mxu0 %v1289
  %v1291 = vand.u32 %v535, 4294901760
  %1292 = vmatpush.msra.mxu0 %v1291
  %v1293 = vand.u32 %v532, 4294901760
  %1294 = vmatpush.msra.mxu0 %v1293
  %v1295 = vand.u32 %v529, 4294901760
  %1296 = vmatpush.msra.mxu0 %v1295
  %v1297 = vand.u32 %v526, 4294901760
  %1298 = vmatpush.msra.mxu0 %v1297
  %v1299 = vand.u32 %v523, 4294901760
  %1300 = vmatpush.msra.mxu0 %v1299
  %v1301 = vand.u32 %v520, 4294901760
  %1302 = vmatpush.msra.mxu0 %v1301
  %v1303 = vand.u32 %v517, 4294901760
  %1304 = vmatpush.msra.mxu0 %v1303
  %v1305 = vand.u32 %v514, 4294901760
  %1306 = vmatpush.msra.mxu0 %v1305
  %v1307 = vand.u32 %v511, 4294901760
  %1308 = vmatpush.msra.mxu0 %v1307
  %v1309 = vand.u32 %v508, 4294901760
  %1310 = vmatpush.msra.mxu0 %v1309
  %v1311 = vand.u32 %v505, 4294901760
  %1312 = vmatpush.msra.mxu0 %v1311
  %v1313 = vand.u32 %v502, 4294901760
  %1314 = vmatpush.msra.mxu0 %v1313
  %v1315 = vand.u32 %v499, 4294901760
  %1316 = vmatpush.msra.mxu0 %v1315
  %v1317 = vand.u32 %v496, 4294901760
  %1318 = vmatpush.msra.mxu0 %v1317
  %v1319 = vand.u32 %v601, 4294901760
  %v1320 = vsub.f32 %v601, %v1319
  %v1321 = vand.u32 %v1320, 4294901760
  %v1322 = vsub.f32 %v1320, %v1321
  %v1323 = vand.u32 %v1322, 4294901760
  %1324 = vmatmul.f32.gmra.mxu0 %v1323
  %v1325 = vpop.f32.mrf.mxu0
  %v1326 = vadd.f32 %v594, %v1325
  %1327 = vdwg.mxu0
  %v1328 = vand.u32 %v541, 4294901760
  %v1329 = vsub.f32 %v541, %v1328
  %v1330 = vand.u32 %v1329, 4294901760
  %v1331 = vsub.f32 %v1329, %v1330
  %v1332 = vand.u32 %v1331, 4294901760
  %1333 = vmatpush.msra.mxu0 %v1332
  %v1334 = vand.u32 %v538, 4294901760
  %v1335 = vsub.f32 %v538, %v1334
  %v1336 = vand.u32 %v1335, 4294901760
  %v1337 = vsub.f32 %v1335, %v1336
  %v1338 = vand.u32 %v1337, 4294901760
  %1339 = vmatpush.msra.mxu0 %v1338
  %v1340 = vand.u32 %v535, 4294901760
  %v1341 = vsub.f32 %v535, %v1340
  %v1342 = vand.u32 %v1341, 4294901760
  %v1343 = vsub.f32 %v1341, %v1342
  %v1344 = vand.u32 %v1343, 4294901760
  %1345 = vmatpush.msra.mxu0 %v1344
  %v1346 = vand.u32 %v532, 4294901760
  %v1347 = vsub.f32 %v532, %v1346
  %v1348 = vand.u32 %v1347, 4294901760
  %v1349 = vsub.f32 %v1347, %v1348
  %v1350 = vand.u32 %v1349, 4294901760
  %1351 = vmatpush.msra.mxu0 %v1350
  %v1352 = vand.u32 %v529, 4294901760
  %v1353 = vsub.f32 %v529, %v1352
  %v1354 = vand.u32 %v1353, 4294901760
  %v1355 = vsub.f32 %v1353, %v1354
  %v1356 = vand.u32 %v1355, 4294901760
  %1357 = vmatpush.msra.mxu0 %v1356
  %v1358 = vand.u32 %v526, 4294901760
  %v1359 = vsub.f32 %v526, %v1358
  %v1360 = vand.u32 %v1359, 4294901760
  %v1361 = vsub.f32 %v1359, %v1360
  %v1362 = vand.u32 %v1361, 4294901760
  %1363 = vmatpush.msra.mxu0 %v1362
  %v1364 = vand.u32 %v523, 4294901760
  %v1365 = vsub.f32 %v523, %v1364
  %v1366 = vand.u32 %v1365, 4294901760
  %v1367 = vsub.f32 %v1365, %v1366
  %v1368 = vand.u32 %v1367, 4294901760
  %1369 = vmatpush.msra.mxu0 %v1368
  %v1370 = vand.u32 %v520, 4294901760
  %v1371 = vsub.f32 %v520, %v1370
  %v1372 = vand.u32 %v1371, 4294901760
  %v1373 = vsub.f32 %v1371, %v1372
  %v1374 = vand.u32 %v1373, 4294901760
  %1375 = vmatpush.msra.mxu0 %v1374
  %v1376 = vand.u32 %v517, 4294901760
  %v1377 = vsub.f32 %v517, %v1376
  %v1378 = vand.u32 %v1377, 4294901760
  %v1379 = vsub.f32 %v1377, %v1378
  %v1380 = vand.u32 %v1379, 4294901760
  %1381 = vmatpush.msra.mxu0 %v1380
  %v1382 = vand.u32 %v514, 4294901760
  %v1383 = vsub.f32 %v514, %v1382
  %v1384 = vand.u32 %v1383, 4294901760
  %v1385 = vsub.f32 %v1383, %v1384
  %v1386 = vand.u32 %v1385, 4294901760
  %1387 = vmatpush.msra.mxu0 %v1386
  %v1388 = vand.u32 %v511, 4294901760
  %v1389 = vsub.f32 %v511, %v1388
  %v1390 = vand.u32 %v1389, 4294901760
  %v1391 = vsub.f32 %v1389, %v1390
  %v1392 = vand.u32 %v1391, 4294901760
  %1393 = vmatpush.msra.mxu0 %v1392
  %v1394 = vand.u32 %v508, 4294901760
  %v1395 = vsub.f32 %v508, %v1394
  %v1396 = vand.u32 %v1395, 4294901760
  %v1397 = vsub.f32 %v1395, %v1396
  %v1398 = vand.u32 %v1397, 4294901760
  %1399 = vmatpush.msra.mxu0 %v1398
  %v1400 = vand.u32 %v505, 4294901760
  %v1401 = vsub.f32 %v505, %v1400
  %v1402 = vand.u32 %v1401, 4294901760
  %v1403 = vsub.f32 %v1401, %v1402
  %v1404 = vand.u32 %v1403, 4294901760
  %1405 = vmatpush.msra.mxu0 %v1404
  %v1406 = vand.u32 %v502, 4294901760
  %v1407 = vsub.f32 %v502, %v1406
  %v1408 = vand.u32 %v1407, 4294901760
  %v1409 = vsub.f32 %v1407, %v1408
  %v1410 = vand.u32 %v1409, 4294901760
  %1411 = vmatpush.msra.mxu0 %v1410
  %v1412 = vand.u32 %v499, 4294901760
  %v1413 = vsub.f32 %v499, %v1412
  %v1414 = vand.u32 %v1413, 4294901760
  %v1415 = vsub.f32 %v1413, %v1414
  %v1416 = vand.u32 %v1415, 4294901760
  %1417 = vmatpush.msra.mxu0 %v1416
  %v1418 = vand.u32 %v496, 4294901760
  %v1419 = vsub.f32 %v496, %v1418
  %v1420 = vand.u32 %v1419, 4294901760
  %v1421 = vsub.f32 %v1419, %v1420
  %v1422 = vand.u32 %v1421, 4294901760
  %1423 = vmatpush.msra.mxu0 %v1422
  %v1424 = vand.u32 %v601, 4294901760
  %1425 = vmatmul.f32.gmra.mxu0 %v1424
  %v1426 = vpop.f32.mrf.mxu0
  %v1427 = vadd.f32 %v1326, %v1426
  %1428 = vdwg.mxu0
  %v1429 = vand.u32 %v541, 4294901760
  %v1430 = vsub.f32 %v541, %v1429
  %1431 = vmatpush.msra.mxu0 %v1430
  %v1432 = vand.u32 %v538, 4294901760
  %v1433 = vsub.f32 %v538, %v1432
  %1434 = vmatpush.msra.mxu0 %v1433
  %v1435 = vand.u32 %v535, 4294901760
  %v1436 = vsub.f32 %v535, %v1435
  %1437 = vmatpush.msra.mxu0 %v1436
  %v1438 = vand.u32 %v532, 4294901760
  %v1439 = vsub.f32 %v532, %v1438
  %1440 = vmatpush.msra.mxu0 %v1439
  %v1441 = vand.u32 %v529, 4294901760
  %v1442 = vsub.f32 %v529, %v1441
  %1443 = vmatpush.msra.mxu0 %v1442
  %v1444 = vand.u32 %v526, 4294901760
  %v1445 = vsub.f32 %v526, %v1444
  %1446 = vmatpush.msra.mxu0 %v1445
  %v1447 = vand.u32 %v523, 4294901760
  %v1448 = vsub.f32 %v523, %v1447
  %1449 = vmatpush.msra.mxu0 %v1448
  %v1450 = vand.u32 %v520, 4294901760
  %v1451 = vsub.f32 %v520, %v1450
  %1452 = vmatpush.msra.mxu0 %v1451
  %v1453 = vand.u32 %v517, 4294901760
  %v1454 = vsub.f32 %v517, %v1453
  %1455 = vmatpush.msra.mxu0 %v1454
  %v1456 = vand.u32 %v514, 4294901760
  %v1457 = vsub.f32 %v514, %v1456
  %1458 = vmatpush.msra.mxu0 %v1457
  %v1459 = vand.u32 %v511, 4294901760
  %v1460 = vsub.f32 %v511, %v1459
  %1461 = vmatpush.msra.mxu0 %v1460
  %v1462 = vand.u32 %v508, 4294901760
  %v1463 = vsub.f32 %v508, %v1462
  %1464 = vmatpush.msra.mxu0 %v1463
  %v1465 = vand.u32 %v505, 4294901760
  %v1466 = vsub.f32 %v505, %v1465
  %1467 = vmatpush.msra.mxu0 %v1466
  %v1468 = vand.u32 %v502, 4294901760
  %v1469 = vsub.f32 %v502, %v1468
  %1470 = vmatpush.msra.mxu0 %v1469
  %v1471 = vand.u32 %v499, 4294901760
  %v1472 = vsub.f32 %v499, %v1471
  %1473 = vmatpush.msra.mxu0 %v1472
  %v1474 = vand.u32 %v496, 4294901760
  %v1475 = vsub.f32 %v496, %v1474
  %1476 = vmatpush.msra.mxu0 %v1475
  %v1477 = vand.u32 %v601, 4294901760
  %v1478 = vsub.f32 %v601, %v1477
  %1479 = vmatmul.f32.gmra.mxu0 %v1478
  %v1480 = vpop.f32.mrf.mxu0
  %v1481 = vadd.f32 %v1427, %v1480
  %1482 = vdwg.mxu0
  %v1483 = vand.u32 %v541, 4294901760
  %1484 = vmatpush.msra.mxu0 %v1483
  %v1485 = vand.u32 %v538, 4294901760
  %1486 = vmatpush.msra.mxu0 %v1485
  %v1487 = vand.u32 %v535, 4294901760
  %1488 = vmatpush.msra.mxu0 %v1487
  %v1489 = vand.u32 %v532, 4294901760
  %1490 = vmatpush.msra.mxu0 %v1489
  %v1491 = vand.u32 %v529, 4294901760
  %1492 = vmatpush.msra.mxu0 %v1491
  %v1493 = vand.u32 %v526, 4294901760
  %1494 = vmatpush.msra.mxu0 %v1493
  %v1495 = vand.u32 %v523, 4294901760
  %1496 = vmatpush.msra.mxu0 %v1495
  %v1497 = vand.u32 %v520, 4294901760
  %1498 = vmatpush.msra.mxu0 %v1497
  %v1499 = vand.u32 %v517, 4294901760
  %1500 = vmatpush.msra.mxu0 %v1499
  %v1501 = vand.u32 %v514, 4294901760
  %1502 = vmatpush.msra.mxu0 %v1501
  %v1503 = vand.u32 %v511, 4294901760
  %1504 = vmatpush.msra.mxu0 %v1503
  %v1505 = vand.u32 %v508, 4294901760
  %1506 = vmatpush.msra.mxu0 %v1505
  %v1507 = vand.u32 %v505, 4294901760
  %1508 = vmatpush.msra.mxu0 %v1507
  %v1509 = vand.u32 %v502, 4294901760
  %1510 = vmatpush.msra.mxu0 %v1509
  %v1511 = vand.u32 %v499, 4294901760
  %1512 = vmatpush.msra.mxu0 %v1511
  %v1513 = vand.u32 %v496, 4294901760
  %1514 = vmatpush.msra.mxu0 %v1513
  %v1515 = vand.u32 %v601, 4294901760
  %v1516 = vsub.f32 %v601, %v1515
  %v1517 = vand.u32 %v1516, 4294901760
  %1518 = vmatmul.f32.gmra.mxu0 %v1517
  %v1519 = vpop.f32.mrf.mxu0
  %v1520 = vadd.f32 %v1481, %v1519
  %1521 = vdwg.mxu0
  %v1522 = vand.u32 %v541, 4294901760
  %v1523 = vsub.f32 %v541, %v1522
  %v1524 = vand.u32 %v1523, 4294901760
  %1525 = vmatpush.msra.mxu0 %v1524
  %v1526 = vand.u32 %v538, 4294901760
  %v1527 = vsub.f32 %v538, %v1526
  %v1528 = vand.u32 %v1527, 4294901760
  %1529 = vmatpush.msra.mxu0 %v1528
  %v1530 = vand.u32 %v535, 4294901760
  %v1531 = vsub.f32 %v535, %v1530
  %v1532 = vand.u32 %v1531, 4294901760
  %1533 = vmatpush.msra.mxu0 %v1532
  %v1534 = vand.u32 %v532, 4294901760
  %v1535 = vsub.f32 %v532, %v1534
  %v1536 = vand.u32 %v1535, 4294901760
  %1537 = vmatpush.msra.mxu0 %v1536
  %v1538 = vand.u32 %v529, 4294901760
  %v1539 = vsub.f32 %v529, %v1538
  %v1540 = vand.u32 %v1539, 4294901760
  %1541 = vmatpush.msra.mxu0 %v1540
  %v1542 = vand.u32 %v526, 4294901760
  %v1543 = vsub.f32 %v526, %v1542
  %v1544 = vand.u32 %v1543, 4294901760
  %1545 = vmatpush.msra.mxu0 %v1544
  %v1546 = vand.u32 %v523, 4294901760
  %v1547 = vsub.f32 %v523, %v1546
  %v1548 = vand.u32 %v1547, 4294901760
  %1549 = vmatpush.msra.mxu0 %v1548
  %v1550 = vand.u32 %v520, 4294901760
  %v1551 = vsub.f32 %v520, %v1550
  %v1552 = vand.u32 %v1551, 4294901760
  %1553 = vmatpush.msra.mxu0 %v1552
  %v1554 = vand.u32 %v517, 4294901760
  %v1555 = vsub.f32 %v517, %v1554
  %v1556 = vand.u32 %v1555, 4294901760
  %1557 = vmatpush.msra.mxu0 %v1556
  %v1558 = vand.u32 %v514, 4294901760
  %v1559 = vsub.f32 %v514, %v1558
  %v1560 = vand.u32 %v1559, 4294901760
  %1561 = vmatpush.msra.mxu0 %v1560
  %v1562 = vand.u32 %v511, 4294901760
  %v1563 = vsub.f32 %v511, %v1562
  %v1564 = vand.u32 %v1563, 4294901760
  %1565 = vmatpush.msra.mxu0 %v1564
  %v1566 = vand.u32 %v508, 4294901760
  %v1567 = vsub.f32 %v508, %v1566
  %v1568 = vand.u32 %v1567, 4294901760
  %1569 = vmatpush.msra.mxu0 %v1568
  %v1570 = vand.u32 %v505, 4294901760
  %v1571 = vsub.f32 %v505, %v1570
  %v1572 = vand.u32 %v1571, 4294901760
  %1573 = vmatpush.msra.mxu0 %v1572
  %v1574 = vand.u32 %v502, 4294901760
  %v1575 = vsub.f32 %v502, %v1574
  %v1576 = vand.u32 %v1575, 4294901760
  %1577 = vmatpush.msra.mxu0 %v1576
  %v1578 = vand.u32 %v499, 4294901760
  %v1579 = vsub.f32 %v499, %v1578
  %v1580 = vand.u32 %v1579, 4294901760
  %1581 = vmatpush.msra.mxu0 %v1580
  %v1582 = vand.u32 %v496, 4294901760
  %v1583 = vsub.f32 %v496, %v1582
  %v1584 = vand.u32 %v1583, 4294901760
  %1585 = vmatpush.msra.mxu0 %v1584
  %v1586 = vand.u32 %v601, 4294901760
  %1587 = vmatmul.f32.gmra.mxu0 %v1586
  %v1588 = vpop.f32.mrf.mxu0
  %v1589 = vadd.f32 %v1520, %v1588
  %1590 = vdwg.mxu0
  %v1591 = vand.u32 %v541, 4294901760
  %1592 = vmatpush.msra.mxu0 %v1591
  %v1593 = vand.u32 %v538, 4294901760
  %1594 = vmatpush.msra.mxu0 %v1593
  %v1595 = vand.u32 %v535, 4294901760
  %1596 = vmatpush.msra.mxu0 %v1595
  %v1597 = vand.u32 %v532, 4294901760
  %1598 = vmatpush.msra.mxu0 %v1597
  %v1599 = vand.u32 %v529, 4294901760
  %1600 = vmatpush.msra.mxu0 %v1599
  %v1601 = vand.u32 %v526, 4294901760
  %1602 = vmatpush.msra.mxu0 %v1601
  %v1603 = vand.u32 %v523, 4294901760
  %1604 = vmatpush.msra.mxu0 %v1603
  %v1605 = vand.u32 %v520, 4294901760
  %1606 = vmatpush.msra.mxu0 %v1605
  %v1607 = vand.u32 %v517, 4294901760
  %1608 = vmatpush.msra.mxu0 %v1607
  %v1609 = vand.u32 %v514, 4294901760
  %1610 = vmatpush.msra.mxu0 %v1609
  %v1611 = vand.u32 %v511, 4294901760
  %1612 = vmatpush.msra.mxu0 %v1611
  %v1613 = vand.u32 %v508, 4294901760
  %1614 = vmatpush.msra.mxu0 %v1613
  %v1615 = vand.u32 %v505, 4294901760
  %1616 = vmatpush.msra.mxu0 %v1615
  %v1617 = vand.u32 %v502, 4294901760
  %1618 = vmatpush.msra.mxu0 %v1617
  %v1619 = vand.u32 %v499, 4294901760
  %1620 = vmatpush.msra.mxu0 %v1619
  %v1621 = vand.u32 %v496, 4294901760
  %1622 = vmatpush.msra.mxu0 %v1621
  %v1623 = vand.u32 %v601, 4294901760
  %1624 = vmatmul.f32.gmra.mxu0 %v1623
  %v1625 = vpop.f32.mrf.mxu0
  %v1626 = vadd.f32 %v1589, %v1625
  %1627 = vdwg.mxu0
  %v1628 = vand.u32 %v589, 4294901760
  %1629 = vmatpush.msra.mxu0 %v1628
  %v1630 = vand.u32 %v586, 4294901760
  %1631 = vmatpush.msra.mxu0 %v1630
  %v1632 = vand.u32 %v583, 4294901760
  %1633 = vmatpush.msra.mxu0 %v1632
  %v1634 = vand.u32 %v580, 4294901760
  %1635 = vmatpush.msra.mxu0 %v1634
  %v1636 = vand.u32 %v577, 4294901760
  %1637 = vmatpush.msra.mxu0 %v1636
  %v1638 = vand.u32 %v574, 4294901760
  %1639 = vmatpush.msra.mxu0 %v1638
  %v1640 = vand.u32 %v571, 4294901760
  %1641 = vmatpush.msra.mxu0 %v1640
  %v1642 = vand.u32 %v568, 4294901760
  %1643 = vmatpush.msra.mxu0 %v1642
  %v1644 = vand.u32 %v565, 4294901760
  %1645 = vmatpush.msra.mxu0 %v1644
  %v1646 = vand.u32 %v562, 4294901760
  %1647 = vmatpush.msra.mxu0 %v1646
  %v1648 = vand.u32 %v559, 4294901760
  %1649 = vmatpush.msra.mxu0 %v1648
  %v1650 = vand.u32 %v556, 4294901760
  %1651 = vmatpush.msra.mxu0 %v1650
  %v1652 = vand.u32 %v553, 4294901760
  %1653 = vmatpush.msra.mxu0 %v1652
  %v1654 = vand.u32 %v550, 4294901760
  %1655 = vmatpush.msra.mxu0 %v1654
  %v1656 = vand.u32 %v547, 4294901760
  %1657 = vmatpush.msra.mxu0 %v1656
  %v1658 = vand.u32 %v544, 4294901760
  %1659 = vmatpush.msra.mxu0 %v1658
  %v1660 = vand.u32 %v602, 4294901760
  %v1661 = vsub.f32 %v602, %v1660
  %v1662 = vand.u32 %v1661, 4294901760
  %v1663 = vsub.f32 %v1661, %v1662
  %v1664 = vand.u32 %v1663, 4294901760
  %1665 = vmatmul.f32.gmra.mxu0 %v1664
  %v1666 = vpop.f32.mrf.mxu0
  %v1667 = vadd.f32 %v1626, %v1666
  %1668 = vdwg.mxu0
  %v1669 = vand.u32 %v589, 4294901760
  %v1670 = vsub.f32 %v589, %v1669
  %v1671 = vand.u32 %v1670, 4294901760
  %v1672 = vsub.f32 %v1670, %v1671
  %v1673 = vand.u32 %v1672, 4294901760
  %1674 = vmatpush.msra.mxu0 %v1673
  %v1675 = vand.u32 %v586, 4294901760
  %v1676 = vsub.f32 %v586, %v1675
  %v1677 = vand.u32 %v1676, 4294901760
  %v1678 = vsub.f32 %v1676, %v1677
  %v1679 = vand.u32 %v1678, 4294901760
  %1680 = vmatpush.msra.mxu0 %v1679
  %v1681 = vand.u32 %v583, 4294901760
  %v1682 = vsub.f32 %v583, %v1681
  %v1683 = vand.u32 %v1682, 4294901760
  %v1684 = vsub.f32 %v1682, %v1683
  %v1685 = vand.u32 %v1684, 4294901760
  %1686 = vmatpush.msra.mxu0 %v1685
  %v1687 = vand.u32 %v580, 4294901760
  %v1688 = vsub.f32 %v580, %v1687
  %v1689 = vand.u32 %v1688, 4294901760
  %v1690 = vsub.f32 %v1688, %v1689
  %v1691 = vand.u32 %v1690, 4294901760
  %1692 = vmatpush.msra.mxu0 %v1691
  %v1693 = vand.u32 %v577, 4294901760
  %v1694 = vsub.f32 %v577, %v1693
  %v1695 = vand.u32 %v1694, 4294901760
  %v1696 = vsub.f32 %v1694, %v1695
  %v1697 = vand.u32 %v1696, 4294901760
  %1698 = vmatpush.msra.mxu0 %v1697
  %v1699 = vand.u32 %v574, 4294901760
  %v1700 = vsub.f32 %v574, %v1699
  %v1701 = vand.u32 %v1700, 4294901760
  %v1702 = vsub.f32 %v1700, %v1701
  %v1703 = vand.u32 %v1702, 4294901760
  %1704 = vmatpush.msra.mxu0 %v1703
  %v1705 = vand.u32 %v571, 4294901760
  %v1706 = vsub.f32 %v571, %v1705
  %v1707 = vand.u32 %v1706, 4294901760
  %v1708 = vsub.f32 %v1706, %v1707
  %v1709 = vand.u32 %v1708, 4294901760
  %1710 = vmatpush.msra.mxu0 %v1709
  %v1711 = vand.u32 %v568, 4294901760
  %v1712 = vsub.f32 %v568, %v1711
  %v1713 = vand.u32 %v1712, 4294901760
  %v1714 = vsub.f32 %v1712, %v1713
  %v1715 = vand.u32 %v1714, 4294901760
  %1716 = vmatpush.msra.mxu0 %v1715
  %v1717 = vand.u32 %v565, 4294901760
  %v1718 = vsub.f32 %v565, %v1717
  %v1719 = vand.u32 %v1718, 4294901760
  %v1720 = vsub.f32 %v1718, %v1719
  %v1721 = vand.u32 %v1720, 4294901760
  %1722 = vmatpush.msra.mxu0 %v1721
  %v1723 = vand.u32 %v562, 4294901760
  %v1724 = vsub.f32 %v562, %v1723
  %v1725 = vand.u32 %v1724, 4294901760
  %v1726 = vsub.f32 %v1724, %v1725
  %v1727 = vand.u32 %v1726, 4294901760
  %1728 = vmatpush.msra.mxu0 %v1727
  %v1729 = vand.u32 %v559, 4294901760
  %v1730 = vsub.f32 %v559, %v1729
  %v1731 = vand.u32 %v1730, 4294901760
  %v1732 = vsub.f32 %v1730, %v1731
  %v1733 = vand.u32 %v1732, 4294901760
  %1734 = vmatpush.msra.mxu0 %v1733
  %v1735 = vand.u32 %v556, 4294901760
  %v1736 = vsub.f32 %v556, %v1735
  %v1737 = vand.u32 %v1736, 4294901760
  %v1738 = vsub.f32 %v1736, %v1737
  %v1739 = vand.u32 %v1738, 4294901760
  %1740 = vmatpush.msra.mxu0 %v1739
  %v1741 = vand.u32 %v553, 4294901760
  %v1742 = vsub.f32 %v553, %v1741
  %v1743 = vand.u32 %v1742, 4294901760
  %v1744 = vsub.f32 %v1742, %v1743
  %v1745 = vand.u32 %v1744, 4294901760
  %1746 = vmatpush.msra.mxu0 %v1745
  %v1747 = vand.u32 %v550, 4294901760
  %v1748 = vsub.f32 %v550, %v1747
  %v1749 = vand.u32 %v1748, 4294901760
  %v1750 = vsub.f32 %v1748, %v1749
  %v1751 = vand.u32 %v1750, 4294901760
  %1752 = vmatpush.msra.mxu0 %v1751
  %v1753 = vand.u32 %v547, 4294901760
  %v1754 = vsub.f32 %v547, %v1753
  %v1755 = vand.u32 %v1754, 4294901760
  %v1756 = vsub.f32 %v1754, %v1755
  %v1757 = vand.u32 %v1756, 4294901760
  %1758 = vmatpush.msra.mxu0 %v1757
  %v1759 = vand.u32 %v544, 4294901760
  %v1760 = vsub.f32 %v544, %v1759
  %v1761 = vand.u32 %v1760, 4294901760
  %v1762 = vsub.f32 %v1760, %v1761
  %v1763 = vand.u32 %v1762, 4294901760
  %1764 = vmatpush.msra.mxu0 %v1763
  %v1765 = vand.u32 %v602, 4294901760
  %1766 = vmatmul.f32.gmra.mxu0 %v1765
  %v1767 = vpop.f32.mrf.mxu0
  %v1768 = vadd.f32 %v1667, %v1767
  %1769 = vdwg.mxu0
  %v1770 = vand.u32 %v589, 4294901760
  %v1771 = vsub.f32 %v589, %v1770
  %1772 = vmatpush.msra.mxu0 %v1771
  %v1773 = vand.u32 %v586, 4294901760
  %v1774 = vsub.f32 %v586, %v1773
  %1775 = vmatpush.msra.mxu0 %v1774
  %v1776 = vand.u32 %v583, 4294901760
  %v1777 = vsub.f32 %v583, %v1776
  %1778 = vmatpush.msra.mxu0 %v1777
  %v1779 = vand.u32 %v580, 4294901760
  %v1780 = vsub.f32 %v580, %v1779
  %1781 = vmatpush.msra.mxu0 %v1780
  %v1782 = vand.u32 %v577, 4294901760
  %v1783 = vsub.f32 %v577, %v1782
  %1784 = vmatpush.msra.mxu0 %v1783
  %v1785 = vand.u32 %v574, 4294901760
  %v1786 = vsub.f32 %v574, %v1785
  %1787 = vmatpush.msra.mxu0 %v1786
  %v1788 = vand.u32 %v571, 4294901760
  %v1789 = vsub.f32 %v571, %v1788
  %1790 = vmatpush.msra.mxu0 %v1789
  %v1791 = vand.u32 %v568, 4294901760
  %v1792 = vsub.f32 %v568, %v1791
  %1793 = vmatpush.msra.mxu0 %v1792
  %v1794 = vand.u32 %v565, 4294901760
  %v1795 = vsub.f32 %v565, %v1794
  %1796 = vmatpush.msra.mxu0 %v1795
  %v1797 = vand.u32 %v562, 4294901760
  %v1798 = vsub.f32 %v562, %v1797
  %1799 = vmatpush.msra.mxu0 %v1798
  %v1800 = vand.u32 %v559, 4294901760
  %v1801 = vsub.f32 %v559, %v1800
  %1802 = vmatpush.msra.mxu0 %v1801
  %v1803 = vand.u32 %v556, 4294901760
  %v1804 = vsub.f32 %v556, %v1803
  %1805 = vmatpush.msra.mxu0 %v1804
  %v1806 = vand.u32 %v553, 4294901760
  %v1807 = vsub.f32 %v553, %v1806
  %1808 = vmatpush.msra.mxu0 %v1807
  %v1809 = vand.u32 %v550, 4294901760
  %v1810 = vsub.f32 %v550, %v1809
  %1811 = vmatpush.msra.mxu0 %v1810
  %v1812 = vand.u32 %v547, 4294901760
  %v1813 = vsub.f32 %v547, %v1812
  %1814 = vmatpush.msra.mxu0 %v1813
  %v1815 = vand.u32 %v544, 4294901760
  %v1816 = vsub.f32 %v544, %v1815
  %1817 = vmatpush.msra.mxu0 %v1816
  %v1818 = vand.u32 %v602, 4294901760
  %v1819 = vsub.f32 %v602, %v1818
  %1820 = vmatmul.f32.gmra.mxu0 %v1819
  %v1821 = vpop.f32.mrf.mxu0
  %v1822 = vadd.f32 %v1768, %v1821
  %1823 = vdwg.mxu0
  %v1824 = vand.u32 %v589, 4294901760
  %1825 = vmatpush.msra.mxu0 %v1824
  %v1826 = vand.u32 %v586, 4294901760
  %1827 = vmatpush.msra.mxu0 %v1826
  %v1828 = vand.u32 %v583, 4294901760
  %1829 = vmatpush.msra.mxu0 %v1828
  %v1830 = vand.u32 %v580, 4294901760
  %1831 = vmatpush.msra.mxu0 %v1830
  %v1832 = vand.u32 %v577, 4294901760
  %1833 = vmatpush.msra.mxu0 %v1832
  %v1834 = vand.u32 %v574, 4294901760
  %1835 = vmatpush.msra.mxu0 %v1834
  %v1836 = vand.u32 %v571, 4294901760
  %1837 = vmatpush.msra.mxu0 %v1836
  %v1838 = vand.u32 %v568, 4294901760
  %1839 = vmatpush.msra.mxu0 %v1838
  %v1840 = vand.u32 %v565, 4294901760
  %1841 = vmatpush.msra.mxu0 %v1840
  %v1842 = vand.u32 %v562, 4294901760
  %1843 = vmatpush.msra.mxu0 %v1842
  %v1844 = vand.u32 %v559, 4294901760
  %1845 = vmatpush.msra.mxu0 %v1844
  %v1846 = vand.u32 %v556, 4294901760
  %1847 = vmatpush.msra.mxu0 %v1846
  %v1848 = vand.u32 %v553, 4294901760
  %1849 = vmatpush.msra.mxu0 %v1848
  %v1850 = vand.u32 %v550, 4294901760
  %1851 = vmatpush.msra.mxu0 %v1850
  %v1852 = vand.u32 %v547, 4294901760
  %1853 = vmatpush.msra.mxu0 %v1852
  %v1854 = vand.u32 %v544, 4294901760
  %1855 = vmatpush.msra.mxu0 %v1854
  %v1856 = vand.u32 %v602, 4294901760
  %v1857 = vsub.f32 %v602, %v1856
  %v1858 = vand.u32 %v1857, 4294901760
  %1859 = vmatmul.f32.gmra.mxu0 %v1858
  %v1860 = vpop.f32.mrf.mxu0
  %v1861 = vadd.f32 %v1822, %v1860
  %1862 = vdwg.mxu0
  %v1863 = vand.u32 %v589, 4294901760
  %v1864 = vsub.f32 %v589, %v1863
  %v1865 = vand.u32 %v1864, 4294901760
  %1866 = vmatpush.msra.mxu0 %v1865
  %v1867 = vand.u32 %v586, 4294901760
  %v1868 = vsub.f32 %v586, %v1867
  %v1869 = vand.u32 %v1868, 4294901760
  %1870 = vmatpush.msra.mxu0 %v1869
  %v1871 = vand.u32 %v583, 4294901760
  %v1872 = vsub.f32 %v583, %v1871
  %v1873 = vand.u32 %v1872, 4294901760
  %1874 = vmatpush.msra.mxu0 %v1873
  %v1875 = vand.u32 %v580, 4294901760
  %v1876 = vsub.f32 %v580, %v1875
  %v1877 = vand.u32 %v1876, 4294901760
  %1878 = vmatpush.msra.mxu0 %v1877
  %v1879 = vand.u32 %v577, 4294901760
  %v1880 = vsub.f32 %v577, %v1879
  %v1881 = vand.u32 %v1880, 4294901760
  %1882 = vmatpush.msra.mxu0 %v1881
  %v1883 = vand.u32 %v574, 4294901760
  %v1884 = vsub.f32 %v574, %v1883
  %v1885 = vand.u32 %v1884, 4294901760
  %1886 = vmatpush.msra.mxu0 %v1885
  %v1887 = vand.u32 %v571, 4294901760
  %v1888 = vsub.f32 %v571, %v1887
  %v1889 = vand.u32 %v1888, 4294901760
  %1890 = vmatpush.msra.mxu0 %v1889
  %v1891 = vand.u32 %v568, 4294901760
  %v1892 = vsub.f32 %v568, %v1891
  %v1893 = vand.u32 %v1892, 4294901760
  %1894 = vmatpush.msra.mxu0 %v1893
  %v1895 = vand.u32 %v565, 4294901760
  %v1896 = vsub.f32 %v565, %v1895
  %v1897 = vand.u32 %v1896, 4294901760
  %1898 = vmatpush.msra.mxu0 %v1897
  %v1899 = vand.u32 %v562, 4294901760
  %v1900 = vsub.f32 %v562, %v1899
  %v1901 = vand.u32 %v1900, 4294901760
  %1902 = vmatpush.msra.mxu0 %v1901
  %v1903 = vand.u32 %v559, 4294901760
  %v1904 = vsub.f32 %v559, %v1903
  %v1905 = vand.u32 %v1904, 4294901760
  %1906 = vmatpush.msra.mxu0 %v1905
  %v1907 = vand.u32 %v556, 4294901760
  %v1908 = vsub.f32 %v556, %v1907
  %v1909 = vand.u32 %v1908, 4294901760
  %1910 = vmatpush.msra.mxu0 %v1909
  %v1911 = vand.u32 %v553, 4294901760
  %v1912 = vsub.f32 %v553, %v1911
  %v1913 = vand.u32 %v1912, 4294901760
  %1914 = vmatpush.msra.mxu0 %v1913
  %v1915 = vand.u32 %v550, 4294901760
  %v1916 = vsub.f32 %v550, %v1915
  %v1917 = vand.u32 %v1916, 4294901760
  %1918 = vmatpush.msra.mxu0 %v1917
  %v1919 = vand.u32 %v547, 4294901760
  %v1920 = vsub.f32 %v547, %v1919
  %v1921 = vand.u32 %v1920, 4294901760
  %1922 = vmatpush.msra.mxu0 %v1921
  %v1923 = vand.u32 %v544, 4294901760
  %v1924 = vsub.f32 %v544, %v1923
  %v1925 = vand.u32 %v1924, 4294901760
  %1926 = vmatpush.msra.mxu0 %v1925
  %v1927 = vand.u32 %v602, 4294901760
  %1928 = vmatmul.f32.gmra.mxu0 %v1927
  %v1929 = vpop.f32.mrf.mxu0
  %v1930 = vadd.f32 %v1861, %v1929
  %1931 = vdwg.mxu0
  %v1932 = vand.u32 %v589, 4294901760
  %1933 = vmatpush.msra.mxu0 %v1932
  %v1934 = vand.u32 %v586, 4294901760
  %1935 = vmatpush.msra.mxu0 %v1934
  %v1936 = vand.u32 %v583, 4294901760
  %1937 = vmatpush.msra.mxu0 %v1936
  %v1938 = vand.u32 %v580, 4294901760
  %1939 = vmatpush.msra.mxu0 %v1938
  %v1940 = vand.u32 %v577, 4294901760
  %1941 = vmatpush.msra.mxu0 %v1940
  %v1942 = vand.u32 %v574, 4294901760
  %1943 = vmatpush.msra.mxu0 %v1942
  %v1944 = vand.u32 %v571, 4294901760
  %1945 = vmatpush.msra.mxu0 %v1944
  %v1946 = vand.u32 %v568, 4294901760
  %1947 = vmatpush.msra.mxu0 %v1946
  %v1948 = vand.u32 %v565, 4294901760
  %1949 = vmatpush.msra.mxu0 %v1948
  %v1950 = vand.u32 %v562, 4294901760
  %1951 = vmatpush.msra.mxu0 %v1950
  %v1952 = vand.u32 %v559, 4294901760
  %1953 = vmatpush.msra.mxu0 %v1952
  %v1954 = vand.u32 %v556, 4294901760
  %1955 = vmatpush.msra.mxu0 %v1954
  %v1956 = vand.u32 %v553, 4294901760
  %1957 = vmatpush.msra.mxu0 %v1956
  %v1958 = vand.u32 %v550, 4294901760
  %1959 = vmatpush.msra.mxu0 %v1958
  %v1960 = vand.u32 %v547, 4294901760
  %1961 = vmatpush.msra.mxu0 %v1960
  %v1962 = vand.u32 %v544, 4294901760
  %1963 = vmatpush.msra.mxu0 %v1962
  %v1964 = vand.u32 %v602, 4294901760
  %1965 = vmatmul.f32.gmra.mxu0 %v1964
  %v1966 = vpop.f32.mrf.mxu0
  %v1967 = vadd.f32 %v1930, %v1966
  %1968 = vdwg.mxu0
  %v1969 = vand.u32 %v542, 4294901760
  %1970 = vmatpush.msra.mxu0 %v1969
  %v1971 = vand.u32 %v539, 4294901760
  %1972 = vmatpush.msra.mxu0 %v1971
  %v1973 = vand.u32 %v536, 4294901760
  %1974 = vmatpush.msra.mxu0 %v1973
  %v1975 = vand.u32 %v533, 4294901760
  %1976 = vmatpush.msra.mxu0 %v1975
  %v1977 = vand.u32 %v530, 4294901760
  %1978 = vmatpush.msra.mxu0 %v1977
  %v1979 = vand.u32 %v527, 4294901760
  %1980 = vmatpush.msra.mxu0 %v1979
  %v1981 = vand.u32 %v524, 4294901760
  %1982 = vmatpush.msra.mxu0 %v1981
  %v1983 = vand.u32 %v521, 4294901760
  %1984 = vmatpush.msra.mxu0 %v1983
  %v1985 = vand.u32 %v518, 4294901760
  %1986 = vmatpush.msra.mxu0 %v1985
  %v1987 = vand.u32 %v515, 4294901760
  %1988 = vmatpush.msra.mxu0 %v1987
  %v1989 = vand.u32 %v512, 4294901760
  %1990 = vmatpush.msra.mxu0 %v1989
  %v1991 = vand.u32 %v509, 4294901760
  %1992 = vmatpush.msra.mxu0 %v1991
  %v1993 = vand.u32 %v506, 4294901760
  %1994 = vmatpush.msra.mxu0 %v1993
  %v1995 = vand.u32 %v503, 4294901760
  %1996 = vmatpush.msra.mxu0 %v1995
  %v1997 = vand.u32 %v500, 4294901760
  %1998 = vmatpush.msra.mxu0 %v1997
  %v1999 = vand.u32 %v497, 4294901760
  %2000 = vmatpush.msra.mxu0 %v1999
  %v2001 = vand.u32 %v601, 4294901760
  %v2002 = vsub.f32 %v601, %v2001
  %v2003 = vand.u32 %v2002, 4294901760
  %v2004 = vsub.f32 %v2002, %v2003
  %v2005 = vand.u32 %v2004, 4294901760
  %2006 = vmatmul.f32.gmra.mxu0 %v2005
  %v2007 = vpop.f32.mrf.mxu0
  %v2008 = vadd.f32 %v595, %v2007
  %2009 = vdwg.mxu0
  %v2010 = vand.u32 %v542, 4294901760
  %v2011 = vsub.f32 %v542, %v2010
  %v2012 = vand.u32 %v2011, 4294901760
  %v2013 = vsub.f32 %v2011, %v2012
  %v2014 = vand.u32 %v2013, 4294901760
  %2015 = vmatpush.msra.mxu0 %v2014
  %v2016 = vand.u32 %v539, 4294901760
  %v2017 = vsub.f32 %v539, %v2016
  %v2018 = vand.u32 %v2017, 4294901760
  %v2019 = vsub.f32 %v2017, %v2018
  %v2020 = vand.u32 %v2019, 4294901760
  %2021 = vmatpush.msra.mxu0 %v2020
  %v2022 = vand.u32 %v536, 4294901760
  %v2023 = vsub.f32 %v536, %v2022
  %v2024 = vand.u32 %v2023, 4294901760
  %v2025 = vsub.f32 %v2023, %v2024
  %v2026 = vand.u32 %v2025, 4294901760
  %2027 = vmatpush.msra.mxu0 %v2026
  %v2028 = vand.u32 %v533, 4294901760
  %v2029 = vsub.f32 %v533, %v2028
  %v2030 = vand.u32 %v2029, 4294901760
  %v2031 = vsub.f32 %v2029, %v2030
  %v2032 = vand.u32 %v2031, 4294901760
  %2033 = vmatpush.msra.mxu0 %v2032
  %v2034 = vand.u32 %v530, 4294901760
  %v2035 = vsub.f32 %v530, %v2034
  %v2036 = vand.u32 %v2035, 4294901760
  %v2037 = vsub.f32 %v2035, %v2036
  %v2038 = vand.u32 %v2037, 4294901760
  %2039 = vmatpush.msra.mxu0 %v2038
  %v2040 = vand.u32 %v527, 4294901760
  %v2041 = vsub.f32 %v527, %v2040
  %v2042 = vand.u32 %v2041, 4294901760
  %v2043 = vsub.f32 %v2041, %v2042
  %v2044 = vand.u32 %v2043, 4294901760
  %2045 = vmatpush.msra.mxu0 %v2044
  %v2046 = vand.u32 %v524, 4294901760
  %v2047 = vsub.f32 %v524, %v2046
  %v2048 = vand.u32 %v2047, 4294901760
  %v2049 = vsub.f32 %v2047, %v2048
  %v2050 = vand.u32 %v2049, 4294901760
  %2051 = vmatpush.msra.mxu0 %v2050
  %v2052 = vand.u32 %v521, 4294901760
  %v2053 = vsub.f32 %v521, %v2052
  %v2054 = vand.u32 %v2053, 4294901760
  %v2055 = vsub.f32 %v2053, %v2054
  %v2056 = vand.u32 %v2055, 4294901760
  %2057 = vmatpush.msra.mxu0 %v2056
  %v2058 = vand.u32 %v518, 4294901760
  %v2059 = vsub.f32 %v518, %v2058
  %v2060 = vand.u32 %v2059, 4294901760
  %v2061 = vsub.f32 %v2059, %v2060
  %v2062 = vand.u32 %v2061, 4294901760
  %2063 = vmatpush.msra.mxu0 %v2062
  %v2064 = vand.u32 %v515, 4294901760
  %v2065 = vsub.f32 %v515, %v2064
  %v2066 = vand.u32 %v2065, 4294901760
  %v2067 = vsub.f32 %v2065, %v2066
  %v2068 = vand.u32 %v2067, 4294901760
  %2069 = vmatpush.msra.mxu0 %v2068
  %v2070 = vand.u32 %v512, 4294901760
  %v2071 = vsub.f32 %v512, %v2070
  %v2072 = vand.u32 %v2071, 4294901760
  %v2073 = vsub.f32 %v2071, %v2072
  %v2074 = vand.u32 %v2073, 4294901760
  %2075 = vmatpush.msra.mxu0 %v2074
  %v2076 = vand.u32 %v509, 4294901760
  %v2077 = vsub.f32 %v509, %v2076
  %v2078 = vand.u32 %v2077, 4294901760
  %v2079 = vsub.f32 %v2077, %v2078
  %v2080 = vand.u32 %v2079, 4294901760
  %2081 = vmatpush.msra.mxu0 %v2080
  %v2082 = vand.u32 %v506, 4294901760
  %v2083 = vsub.f32 %v506, %v2082
  %v2084 = vand.u32 %v2083, 4294901760
  %v2085 = vsub.f32 %v2083, %v2084
  %v2086 = vand.u32 %v2085, 4294901760
  %2087 = vmatpush.msra.mxu0 %v2086
  %v2088 = vand.u32 %v503, 4294901760
  %v2089 = vsub.f32 %v503, %v2088
  %v2090 = vand.u32 %v2089, 4294901760
  %v2091 = vsub.f32 %v2089, %v2090
  %v2092 = vand.u32 %v2091, 4294901760
  %2093 = vmatpush.msra.mxu0 %v2092
  %v2094 = vand.u32 %v500, 4294901760
  %v2095 = vsub.f32 %v500, %v2094
  %v2096 = vand.u32 %v2095, 4294901760
  %v2097 = vsub.f32 %v2095, %v2096
  %v2098 = vand.u32 %v2097, 4294901760
  %2099 = vmatpush.msra.mxu0 %v2098
  %v2100 = vand.u32 %v497, 4294901760
  %v2101 = vsub.f32 %v497, %v2100
  %v2102 = vand.u32 %v2101, 4294901760
  %v2103 = vsub.f32 %v2101, %v2102
  %v2104 = vand.u32 %v2103, 4294901760
  %2105 = vmatpush.msra.mxu0 %v2104
  %v2106 = vand.u32 %v601, 4294901760
  %2107 = vmatmul.f32.gmra.mxu0 %v2106
  %v2108 = vpop.f32.mrf.mxu0
  %v2109 = vadd.f32 %v2008, %v2108
  %2110 = vdwg.mxu0
  %v2111 = vand.u32 %v542, 4294901760
  %v2112 = vsub.f32 %v542, %v2111
  %2113 = vmatpush.msra.mxu0 %v2112
  %v2114 = vand.u32 %v539, 4294901760
  %v2115 = vsub.f32 %v539, %v2114
  %2116 = vmatpush.msra.mxu0 %v2115
  %v2117 = vand.u32 %v536, 4294901760
  %v2118 = vsub.f32 %v536, %v2117
  %2119 = vmatpush.msra.mxu0 %v2118
  %v2120 = vand.u32 %v533, 4294901760
  %v2121 = vsub.f32 %v533, %v2120
  %2122 = vmatpush.msra.mxu0 %v2121
  %v2123 = vand.u32 %v530, 4294901760
  %v2124 = vsub.f32 %v530, %v2123
  %2125 = vmatpush.msra.mxu0 %v2124
  %v2126 = vand.u32 %v527, 4294901760
  %v2127 = vsub.f32 %v527, %v2126
  %2128 = vmatpush.msra.mxu0 %v2127
  %v2129 = vand.u32 %v524, 4294901760
  %v2130 = vsub.f32 %v524, %v2129
  %2131 = vmatpush.msra.mxu0 %v2130
  %v2132 = vand.u32 %v521, 4294901760
  %v2133 = vsub.f32 %v521, %v2132
  %2134 = vmatpush.msra.mxu0 %v2133
  %v2135 = vand.u32 %v518, 4294901760
  %v2136 = vsub.f32 %v518, %v2135
  %2137 = vmatpush.msra.mxu0 %v2136
  %v2138 = vand.u32 %v515, 4294901760
  %v2139 = vsub.f32 %v515, %v2138
  %2140 = vmatpush.msra.mxu0 %v2139
  %v2141 = vand.u32 %v512, 4294901760
  %v2142 = vsub.f32 %v512, %v2141
  %2143 = vmatpush.msra.mxu0 %v2142
  %v2144 = vand.u32 %v509, 4294901760
  %v2145 = vsub.f32 %v509, %v2144
  %2146 = vmatpush.msra.mxu0 %v2145
  %v2147 = vand.u32 %v506, 4294901760
  %v2148 = vsub.f32 %v506, %v2147
  %2149 = vmatpush.msra.mxu0 %v2148
  %v2150 = vand.u32 %v503, 4294901760
  %v2151 = vsub.f32 %v503, %v2150
  %2152 = vmatpush.msra.mxu0 %v2151
  %v2153 = vand.u32 %v500, 4294901760
  %v2154 = vsub.f32 %v500, %v2153
  %2155 = vmatpush.msra.mxu0 %v2154
  %v2156 = vand.u32 %v497, 4294901760
  %v2157 = vsub.f32 %v497, %v2156
  %2158 = vmatpush.msra.mxu0 %v2157
  %v2159 = vand.u32 %v601, 4294901760
  %v2160 = vsub.f32 %v601, %v2159
  %2161 = vmatmul.f32.gmra.mxu0 %v2160
  %v2162 = vpop.f32.mrf.mxu0
  %v2163 = vadd.f32 %v2109, %v2162
  %2164 = vdwg.mxu0
  %v2165 = vand.u32 %v542, 4294901760
  %2166 = vmatpush.msra.mxu0 %v2165
  %v2167 = vand.u32 %v539, 4294901760
  %2168 = vmatpush.msra.mxu0 %v2167
  %v2169 = vand.u32 %v536, 4294901760
  %2170 = vmatpush.msra.mxu0 %v2169
  %v2171 = vand.u32 %v533, 4294901760
  %2172 = vmatpush.msra.mxu0 %v2171
  %v2173 = vand.u32 %v530, 4294901760
  %2174 = vmatpush.msra.mxu0 %v2173
  %v2175 = vand.u32 %v527, 4294901760
  %2176 = vmatpush.msra.mxu0 %v2175
  %v2177 = vand.u32 %v524, 4294901760
  %2178 = vmatpush.msra.mxu0 %v2177
  %v2179 = vand.u32 %v521, 4294901760
  %2180 = vmatpush.msra.mxu0 %v2179
  %v2181 = vand.u32 %v518, 4294901760
  %2182 = vmatpush.msra.mxu0 %v2181
  %v2183 = vand.u32 %v515, 4294901760
  %2184 = vmatpush.msra.mxu0 %v2183
  %v2185 = vand.u32 %v512, 4294901760
  %2186 = vmatpush.msra.mxu0 %v2185
  %v2187 = vand.u32 %v509, 4294901760
  %2188 = vmatpush.msra.mxu0 %v2187
  %v2189 = vand.u32 %v506, 4294901760
  %2190 = vmatpush.msra.mxu0 %v2189
  %v2191 = vand.u32 %v503, 4294901760
  %2192 = vmatpush.msra.mxu0 %v2191
  %v2193 = vand.u32 %v500, 4294901760
  %2194 = vmatpush.msra.mxu0 %v2193
  %v2195 = vand.u32 %v497, 4294901760
  %2196 = vmatpush.msra.mxu0 %v2195
  %v2197 = vand.u32 %v601, 4294901760
  %v2198 = vsub.f32 %v601, %v2197
  %v2199 = vand.u32 %v2198, 4294901760
  %2200 = vmatmul.f32.gmra.mxu0 %v2199
  %v2201 = vpop.f32.mrf.mxu0
  %v2202 = vadd.f32 %v2163, %v2201
  %2203 = vdwg.mxu0
  %v2204 = vand.u32 %v542, 4294901760
  %v2205 = vsub.f32 %v542, %v2204
  %v2206 = vand.u32 %v2205, 4294901760
  %2207 = vmatpush.msra.mxu0 %v2206
  %v2208 = vand.u32 %v539, 4294901760
  %v2209 = vsub.f32 %v539, %v2208
  %v2210 = vand.u32 %v2209, 4294901760
  %2211 = vmatpush.msra.mxu0 %v2210
  %v2212 = vand.u32 %v536, 4294901760
  %v2213 = vsub.f32 %v536, %v2212
  %v2214 = vand.u32 %v2213, 4294901760
  %2215 = vmatpush.msra.mxu0 %v2214
  %v2216 = vand.u32 %v533, 4294901760
  %v2217 = vsub.f32 %v533, %v2216
  %v2218 = vand.u32 %v2217, 4294901760
  %2219 = vmatpush.msra.mxu0 %v2218
  %v2220 = vand.u32 %v530, 4294901760
  %v2221 = vsub.f32 %v530, %v2220
  %v2222 = vand.u32 %v2221, 4294901760
  %2223 = vmatpush.msra.mxu0 %v2222
  %v2224 = vand.u32 %v527, 4294901760
  %v2225 = vsub.f32 %v527, %v2224
  %v2226 = vand.u32 %v2225, 4294901760
  %2227 = vmatpush.msra.mxu0 %v2226
  %v2228 = vand.u32 %v524, 4294901760
  %v2229 = vsub.f32 %v524, %v2228
  %v2230 = vand.u32 %v2229, 4294901760
  %2231 = vmatpush.msra.mxu0 %v2230
  %v2232 = vand.u32 %v521, 4294901760
  %v2233 = vsub.f32 %v521, %v2232
  %v2234 = vand.u32 %v2233, 4294901760
  %2235 = vmatpush.msra.mxu0 %v2234
  %v2236 = vand.u32 %v518, 4294901760
  %v2237 = vsub.f32 %v518, %v2236
  %v2238 = vand.u32 %v2237, 4294901760
  %2239 = vmatpush.msra.mxu0 %v2238
  %v2240 = vand.u32 %v515, 4294901760
  %v2241 = vsub.f32 %v515, %v2240
  %v2242 = vand.u32 %v2241, 4294901760
  %2243 = vmatpush.msra.mxu0 %v2242
  %v2244 = vand.u32 %v512, 4294901760
  %v2245 = vsub.f32 %v512, %v2244
  %v2246 = vand.u32 %v2245, 4294901760
  %2247 = vmatpush.msra.mxu0 %v2246
  %v2248 = vand.u32 %v509, 4294901760
  %v2249 = vsub.f32 %v509, %v2248
  %v2250 = vand.u32 %v2249, 4294901760
  %2251 = vmatpush.msra.mxu0 %v2250
  %v2252 = vand.u32 %v506, 4294901760
  %v2253 = vsub.f32 %v506, %v2252
  %v2254 = vand.u32 %v2253, 4294901760
  %2255 = vmatpush.msra.mxu0 %v2254
  %v2256 = vand.u32 %v503, 4294901760
  %v2257 = vsub.f32 %v503, %v2256
  %v2258 = vand.u32 %v2257, 4294901760
  %2259 = vmatpush.msra.mxu0 %v2258
  %v2260 = vand.u32 %v500, 4294901760
  %v2261 = vsub.f32 %v500, %v2260
  %v2262 = vand.u32 %v2261, 4294901760
  %2263 = vmatpush.msra.mxu0 %v2262
  %v2264 = vand.u32 %v497, 4294901760
  %v2265 = vsub.f32 %v497, %v2264
  %v2266 = vand.u32 %v2265, 4294901760
  %2267 = vmatpush.msra.mxu0 %v2266
  %v2268 = vand.u32 %v601, 4294901760
  %2269 = vmatmul.f32.gmra.mxu0 %v2268
  %v2270 = vpop.f32.mrf.mxu0
  %v2271 = vadd.f32 %v2202, %v2270
  %2272 = vdwg.mxu0
  %v2273 = vand.u32 %v542, 4294901760
  %2274 = vmatpush.msra.mxu0 %v2273
  %v2275 = vand.u32 %v539, 4294901760
  %2276 = vmatpush.msra.mxu0 %v2275
  %v2277 = vand.u32 %v536, 4294901760
  %2278 = vmatpush.msra.mxu0 %v2277
  %v2279 = vand.u32 %v533, 4294901760
  %2280 = vmatpush.msra.mxu0 %v2279
  %v2281 = vand.u32 %v530, 4294901760
  %2282 = vmatpush.msra.mxu0 %v2281
  %v2283 = vand.u32 %v527, 4294901760
  %2284 = vmatpush.msra.mxu0 %v2283
  %v2285 = vand.u32 %v524, 4294901760
  %2286 = vmatpush.msra.mxu0 %v2285
  %v2287 = vand.u32 %v521, 4294901760
  %2288 = vmatpush.msra.mxu0 %v2287
  %v2289 = vand.u32 %v518, 4294901760
  %2290 = vmatpush.msra.mxu0 %v2289
  %v2291 = vand.u32 %v515, 4294901760
  %2292 = vmatpush.msra.mxu0 %v2291
  %v2293 = vand.u32 %v512, 4294901760
  %2294 = vmatpush.msra.mxu0 %v2293
  %v2295 = vand.u32 %v509, 4294901760
  %2296 = vmatpush.msra.mxu0 %v2295
  %v2297 = vand.u32 %v506, 4294901760
  %2298 = vmatpush.msra.mxu0 %v2297
  %v2299 = vand.u32 %v503, 4294901760
  %2300 = vmatpush.msra.mxu0 %v2299
  %v2301 = vand.u32 %v500, 4294901760
  %2302 = vmatpush.msra.mxu0 %v2301
  %v2303 = vand.u32 %v497, 4294901760
  %2304 = vmatpush.msra.mxu0 %v2303
  %v2305 = vand.u32 %v601, 4294901760
  %2306 = vmatmul.f32.gmra.mxu0 %v2305
  %v2307 = vpop.f32.mrf.mxu0
  %v2308 = vadd.f32 %v2271, %v2307
  %2309 = vdwg.mxu0
  %v2310 = vand.u32 %v590, 4294901760
  %2311 = vmatpush.msra.mxu0 %v2310
  %v2312 = vand.u32 %v587, 4294901760
  %2313 = vmatpush.msra.mxu0 %v2312
  %v2314 = vand.u32 %v584, 4294901760
  %2315 = vmatpush.msra.mxu0 %v2314
  %v2316 = vand.u32 %v581, 4294901760
  %2317 = vmatpush.msra.mxu0 %v2316
  %v2318 = vand.u32 %v578, 4294901760
  %2319 = vmatpush.msra.mxu0 %v2318
  %v2320 = vand.u32 %v575, 4294901760
  %2321 = vmatpush.msra.mxu0 %v2320
  %v2322 = vand.u32 %v572, 4294901760
  %2323 = vmatpush.msra.mxu0 %v2322
  %v2324 = vand.u32 %v569, 4294901760
  %2325 = vmatpush.msra.mxu0 %v2324
  %v2326 = vand.u32 %v566, 4294901760
  %2327 = vmatpush.msra.mxu0 %v2326
  %v2328 = vand.u32 %v563, 4294901760
  %2329 = vmatpush.msra.mxu0 %v2328
  %v2330 = vand.u32 %v560, 4294901760
  %2331 = vmatpush.msra.mxu0 %v2330
  %v2332 = vand.u32 %v557, 4294901760
  %2333 = vmatpush.msra.mxu0 %v2332
  %v2334 = vand.u32 %v554, 4294901760
  %2335 = vmatpush.msra.mxu0 %v2334
  %v2336 = vand.u32 %v551, 4294901760
  %2337 = vmatpush.msra.mxu0 %v2336
  %v2338 = vand.u32 %v548, 4294901760
  %2339 = vmatpush.msra.mxu0 %v2338
  %v2340 = vand.u32 %v545, 4294901760
  %2341 = vmatpush.msra.mxu0 %v2340
  %v2342 = vand.u32 %v602, 4294901760
  %v2343 = vsub.f32 %v602, %v2342
  %v2344 = vand.u32 %v2343, 4294901760
  %v2345 = vsub.f32 %v2343, %v2344
  %v2346 = vand.u32 %v2345, 4294901760
  %2347 = vmatmul.f32.gmra.mxu0 %v2346
  %v2348 = vpop.f32.mrf.mxu0
  %v2349 = vadd.f32 %v2308, %v2348
  %2350 = vdwg.mxu0
  %v2351 = vand.u32 %v590, 4294901760
  %v2352 = vsub.f32 %v590, %v2351
  %v2353 = vand.u32 %v2352, 4294901760
  %v2354 = vsub.f32 %v2352, %v2353
  %v2355 = vand.u32 %v2354, 4294901760
  %2356 = vmatpush.msra.mxu0 %v2355
  %v2357 = vand.u32 %v587, 4294901760
  %v2358 = vsub.f32 %v587, %v2357
  %v2359 = vand.u32 %v2358, 4294901760
  %v2360 = vsub.f32 %v2358, %v2359
  %v2361 = vand.u32 %v2360, 4294901760
  %2362 = vmatpush.msra.mxu0 %v2361
  %v2363 = vand.u32 %v584, 4294901760
  %v2364 = vsub.f32 %v584, %v2363
  %v2365 = vand.u32 %v2364, 4294901760
  %v2366 = vsub.f32 %v2364, %v2365
  %v2367 = vand.u32 %v2366, 4294901760
  %2368 = vmatpush.msra.mxu0 %v2367
  %v2369 = vand.u32 %v581, 4294901760
  %v2370 = vsub.f32 %v581, %v2369
  %v2371 = vand.u32 %v2370, 4294901760
  %v2372 = vsub.f32 %v2370, %v2371
  %v2373 = vand.u32 %v2372, 4294901760
  %2374 = vmatpush.msra.mxu0 %v2373
  %v2375 = vand.u32 %v578, 4294901760
  %v2376 = vsub.f32 %v578, %v2375
  %v2377 = vand.u32 %v2376, 4294901760
  %v2378 = vsub.f32 %v2376, %v2377
  %v2379 = vand.u32 %v2378, 4294901760
  %2380 = vmatpush.msra.mxu0 %v2379
  %v2381 = vand.u32 %v575, 4294901760
  %v2382 = vsub.f32 %v575, %v2381
  %v2383 = vand.u32 %v2382, 4294901760
  %v2384 = vsub.f32 %v2382, %v2383
  %v2385 = vand.u32 %v2384, 4294901760
  %2386 = vmatpush.msra.mxu0 %v2385
  %v2387 = vand.u32 %v572, 4294901760
  %v2388 = vsub.f32 %v572, %v2387
  %v2389 = vand.u32 %v2388, 4294901760
  %v2390 = vsub.f32 %v2388, %v2389
  %v2391 = vand.u32 %v2390, 4294901760
  %2392 = vmatpush.msra.mxu0 %v2391
  %v2393 = vand.u32 %v569, 4294901760
  %v2394 = vsub.f32 %v569, %v2393
  %v2395 = vand.u32 %v2394, 4294901760
  %v2396 = vsub.f32 %v2394, %v2395
  %v2397 = vand.u32 %v2396, 4294901760
  %2398 = vmatpush.msra.mxu0 %v2397
  %v2399 = vand.u32 %v566, 4294901760
  %v2400 = vsub.f32 %v566, %v2399
  %v2401 = vand.u32 %v2400, 4294901760
  %v2402 = vsub.f32 %v2400, %v2401
  %v2403 = vand.u32 %v2402, 4294901760
  %2404 = vmatpush.msra.mxu0 %v2403
  %v2405 = vand.u32 %v563, 4294901760
  %v2406 = vsub.f32 %v563, %v2405
  %v2407 = vand.u32 %v2406, 4294901760
  %v2408 = vsub.f32 %v2406, %v2407
  %v2409 = vand.u32 %v2408, 4294901760
  %2410 = vmatpush.msra.mxu0 %v2409
  %v2411 = vand.u32 %v560, 4294901760
  %v2412 = vsub.f32 %v560, %v2411
  %v2413 = vand.u32 %v2412, 4294901760
  %v2414 = vsub.f32 %v2412, %v2413
  %v2415 = vand.u32 %v2414, 4294901760
  %2416 = vmatpush.msra.mxu0 %v2415
  %v2417 = vand.u32 %v557, 4294901760
  %v2418 = vsub.f32 %v557, %v2417
  %v2419 = vand.u32 %v2418, 4294901760
  %v2420 = vsub.f32 %v2418, %v2419
  %v2421 = vand.u32 %v2420, 4294901760
  %2422 = vmatpush.msra.mxu0 %v2421
  %v2423 = vand.u32 %v554, 4294901760
  %v2424 = vsub.f32 %v554, %v2423
  %v2425 = vand.u32 %v2424, 4294901760
  %v2426 = vsub.f32 %v2424, %v2425
  %v2427 = vand.u32 %v2426, 4294901760
  %2428 = vmatpush.msra.mxu0 %v2427
  %v2429 = vand.u32 %v551, 4294901760
  %v2430 = vsub.f32 %v551, %v2429
  %v2431 = vand.u32 %v2430, 4294901760
  %v2432 = vsub.f32 %v2430, %v2431
  %v2433 = vand.u32 %v2432, 4294901760
  %2434 = vmatpush.msra.mxu0 %v2433
  %v2435 = vand.u32 %v548, 4294901760
  %v2436 = vsub.f32 %v548, %v2435
  %v2437 = vand.u32 %v2436, 4294901760
  %v2438 = vsub.f32 %v2436, %v2437
  %v2439 = vand.u32 %v2438, 4294901760
  %2440 = vmatpush.msra.mxu0 %v2439
  %v2441 = vand.u32 %v545, 4294901760
  %v2442 = vsub.f32 %v545, %v2441
  %v2443 = vand.u32 %v2442, 4294901760
  %v2444 = vsub.f32 %v2442, %v2443
  %v2445 = vand.u32 %v2444, 4294901760
  %2446 = vmatpush.msra.mxu0 %v2445
  %v2447 = vand.u32 %v602, 4294901760
  %2448 = vmatmul.f32.gmra.mxu0 %v2447
  %v2449 = vpop.f32.mrf.mxu0
  %v2450 = vadd.f32 %v2349, %v2449
  %2451 = vdwg.mxu0
  %v2452 = vand.u32 %v590, 4294901760
  %v2453 = vsub.f32 %v590, %v2452
  %2454 = vmatpush.msra.mxu0 %v2453
  %v2455 = vand.u32 %v587, 4294901760
  %v2456 = vsub.f32 %v587, %v2455
  %2457 = vmatpush.msra.mxu0 %v2456
  %v2458 = vand.u32 %v584, 4294901760
  %v2459 = vsub.f32 %v584, %v2458
  %2460 = vmatpush.msra.mxu0 %v2459
  %v2461 = vand.u32 %v581, 4294901760
  %v2462 = vsub.f32 %v581, %v2461
  %2463 = vmatpush.msra.mxu0 %v2462
  %v2464 = vand.u32 %v578, 4294901760
  %v2465 = vsub.f32 %v578, %v2464
  %2466 = vmatpush.msra.mxu0 %v2465
  %v2467 = vand.u32 %v575, 4294901760
  %v2468 = vsub.f32 %v575, %v2467
  %2469 = vmatpush.msra.mxu0 %v2468
  %v2470 = vand.u32 %v572, 4294901760
  %v2471 = vsub.f32 %v572, %v2470
  %2472 = vmatpush.msra.mxu0 %v2471
  %v2473 = vand.u32 %v569, 4294901760
  %v2474 = vsub.f32 %v569, %v2473
  %2475 = vmatpush.msra.mxu0 %v2474
  %v2476 = vand.u32 %v566, 4294901760
  %v2477 = vsub.f32 %v566, %v2476
  %2478 = vmatpush.msra.mxu0 %v2477
  %v2479 = vand.u32 %v563, 4294901760
  %v2480 = vsub.f32 %v563, %v2479
  %2481 = vmatpush.msra.mxu0 %v2480
  %v2482 = vand.u32 %v560, 4294901760
  %v2483 = vsub.f32 %v560, %v2482
  %2484 = vmatpush.msra.mxu0 %v2483
  %v2485 = vand.u32 %v557, 4294901760
  %v2486 = vsub.f32 %v557, %v2485
  %2487 = vmatpush.msra.mxu0 %v2486
  %v2488 = vand.u32 %v554, 4294901760
  %v2489 = vsub.f32 %v554, %v2488
  %2490 = vmatpush.msra.mxu0 %v2489
  %v2491 = vand.u32 %v551, 4294901760
  %v2492 = vsub.f32 %v551, %v2491
  %2493 = vmatpush.msra.mxu0 %v2492
  %v2494 = vand.u32 %v548, 4294901760
  %v2495 = vsub.f32 %v548, %v2494
  %2496 = vmatpush.msra.mxu0 %v2495
  %v2497 = vand.u32 %v545, 4294901760
  %v2498 = vsub.f32 %v545, %v2497
  %2499 = vmatpush.msra.mxu0 %v2498
  %v2500 = vand.u32 %v602, 4294901760
  %v2501 = vsub.f32 %v602, %v2500
  %2502 = vmatmul.f32.gmra.mxu0 %v2501
  %v2503 = vpop.f32.mrf.mxu0
  %v2504 = vadd.f32 %v2450, %v2503
  %2505 = vdwg.mxu0
  %v2506 = vand.u32 %v590, 4294901760
  %2507 = vmatpush.msra.mxu0 %v2506
  %v2508 = vand.u32 %v587, 4294901760
  %2509 = vmatpush.msra.mxu0 %v2508
  %v2510 = vand.u32 %v584, 4294901760
  %2511 = vmatpush.msra.mxu0 %v2510
  %v2512 = vand.u32 %v581, 4294901760
  %2513 = vmatpush.msra.mxu0 %v2512
  %v2514 = vand.u32 %v578, 4294901760
  %2515 = vmatpush.msra.mxu0 %v2514
  %v2516 = vand.u32 %v575, 4294901760
  %2517 = vmatpush.msra.mxu0 %v2516
  %v2518 = vand.u32 %v572, 4294901760
  %2519 = vmatpush.msra.mxu0 %v2518
  %v2520 = vand.u32 %v569, 4294901760
  %2521 = vmatpush.msra.mxu0 %v2520
  %v2522 = vand.u32 %v566, 4294901760
  %2523 = vmatpush.msra.mxu0 %v2522
  %v2524 = vand.u32 %v563, 4294901760
  %2525 = vmatpush.msra.mxu0 %v2524
  %v2526 = vand.u32 %v560, 4294901760
  %2527 = vmatpush.msra.mxu0 %v2526
  %v2528 = vand.u32 %v557, 4294901760
  %2529 = vmatpush.msra.mxu0 %v2528
  %v2530 = vand.u32 %v554, 4294901760
  %2531 = vmatpush.msra.mxu0 %v2530
  %v2532 = vand.u32 %v551, 4294901760
  %2533 = vmatpush.msra.mxu0 %v2532
  %v2534 = vand.u32 %v548, 4294901760
  %2535 = vmatpush.msra.mxu0 %v2534
  %v2536 = vand.u32 %v545, 4294901760
  %2537 = vmatpush.msra.mxu0 %v2536
  %v2538 = vand.u32 %v602, 4294901760
  %v2539 = vsub.f32 %v602, %v2538
  %v2540 = vand.u32 %v2539, 4294901760
  %2541 = vmatmul.f32.gmra.mxu0 %v2540
  %v2542 = vpop.f32.mrf.mxu0
  %v2543 = vadd.f32 %v2504, %v2542
  %2544 = vdwg.mxu0
  %v2545 = vand.u32 %v590, 4294901760
  %v2546 = vsub.f32 %v590, %v2545
  %v2547 = vand.u32 %v2546, 4294901760
  %2548 = vmatpush.msra.mxu0 %v2547
  %v2549 = vand.u32 %v587, 4294901760
  %v2550 = vsub.f32 %v587, %v2549
  %v2551 = vand.u32 %v2550, 4294901760
  %2552 = vmatpush.msra.mxu0 %v2551
  %v2553 = vand.u32 %v584, 4294901760
  %v2554 = vsub.f32 %v584, %v2553
  %v2555 = vand.u32 %v2554, 4294901760
  %2556 = vmatpush.msra.mxu0 %v2555
  %v2557 = vand.u32 %v581, 4294901760
  %v2558 = vsub.f32 %v581, %v2557
  %v2559 = vand.u32 %v2558, 4294901760
  %2560 = vmatpush.msra.mxu0 %v2559
  %v2561 = vand.u32 %v578, 4294901760
  %v2562 = vsub.f32 %v578, %v2561
  %v2563 = vand.u32 %v2562, 4294901760
  %2564 = vmatpush.msra.mxu0 %v2563
  %v2565 = vand.u32 %v575, 4294901760
  %v2566 = vsub.f32 %v575, %v2565
  %v2567 = vand.u32 %v2566, 4294901760
  %2568 = vmatpush.msra.mxu0 %v2567
  %v2569 = vand.u32 %v572, 4294901760
  %v2570 = vsub.f32 %v572, %v2569
  %v2571 = vand.u32 %v2570, 4294901760
  %2572 = vmatpush.msra.mxu0 %v2571
  %v2573 = vand.u32 %v569, 4294901760
  %v2574 = vsub.f32 %v569, %v2573
  %v2575 = vand.u32 %v2574, 4294901760
  %2576 = vmatpush.msra.mxu0 %v2575
  %v2577 = vand.u32 %v566, 4294901760
  %v2578 = vsub.f32 %v566, %v2577
  %v2579 = vand.u32 %v2578, 4294901760
  %2580 = vmatpush.msra.mxu0 %v2579
  %v2581 = vand.u32 %v563, 4294901760
  %v2582 = vsub.f32 %v563, %v2581
  %v2583 = vand.u32 %v2582, 4294901760
  %2584 = vmatpush.msra.mxu0 %v2583
  %v2585 = vand.u32 %v560, 4294901760
  %v2586 = vsub.f32 %v560, %v2585
  %v2587 = vand.u32 %v2586, 4294901760
  %2588 = vmatpush.msra.mxu0 %v2587
  %v2589 = vand.u32 %v557, 4294901760
  %v2590 = vsub.f32 %v557, %v2589
  %v2591 = vand.u32 %v2590, 4294901760
  %2592 = vmatpush.msra.mxu0 %v2591
  %v2593 = vand.u32 %v554, 4294901760
  %v2594 = vsub.f32 %v554, %v2593
  %v2595 = vand.u32 %v2594, 4294901760
  %2596 = vmatpush.msra.mxu0 %v2595
  %v2597 = vand.u32 %v551, 4294901760
  %v2598 = vsub.f32 %v551, %v2597
  %v2599 = vand.u32 %v2598, 4294901760
  %2600 = vmatpush.msra.mxu0 %v2599
  %v2601 = vand.u32 %v548, 4294901760
  %v2602 = vsub.f32 %v548, %v2601
  %v2603 = vand.u32 %v2602, 4294901760
  %2604 = vmatpush.msra.mxu0 %v2603
  %v2605 = vand.u32 %v545, 4294901760
  %v2606 = vsub.f32 %v545, %v2605
  %v2607 = vand.u32 %v2606, 4294901760
  %2608 = vmatpush.msra.mxu0 %v2607
  %v2609 = vand.u32 %v602, 4294901760
  %2610 = vmatmul.f32.gmra.mxu0 %v2609
  %v2611 = vpop.f32.mrf.mxu0
  %v2612 = vadd.f32 %v2543, %v2611
  %2613 = vdwg.mxu0
  %v2614 = vand.u32 %v590, 4294901760
  %2615 = vmatpush.msra.mxu0 %v2614
  %v2616 = vand.u32 %v587, 4294901760
  %2617 = vmatpush.msra.mxu0 %v2616
  %v2618 = vand.u32 %v584, 4294901760
  %2619 = vmatpush.msra.mxu0 %v2618
  %v2620 = vand.u32 %v581, 4294901760
  %2621 = vmatpush.msra.mxu0 %v2620
  %v2622 = vand.u32 %v578, 4294901760
  %2623 = vmatpush.msra.mxu0 %v2622
  %v2624 = vand.u32 %v575, 4294901760
  %2625 = vmatpush.msra.mxu0 %v2624
  %v2626 = vand.u32 %v572, 4294901760
  %2627 = vmatpush.msra.mxu0 %v2626
  %v2628 = vand.u32 %v569, 4294901760
  %2629 = vmatpush.msra.mxu0 %v2628
  %v2630 = vand.u32 %v566, 4294901760
  %2631 = vmatpush.msra.mxu0 %v2630
  %v2632 = vand.u32 %v563, 4294901760
  %2633 = vmatpush.msra.mxu0 %v2632
  %v2634 = vand.u32 %v560, 4294901760
  %2635 = vmatpush.msra.mxu0 %v2634
  %v2636 = vand.u32 %v557, 4294901760
  %2637 = vmatpush.msra.mxu0 %v2636
  %v2638 = vand.u32 %v554, 4294901760
  %2639 = vmatpush.msra.mxu0 %v2638
  %v2640 = vand.u32 %v551, 4294901760
  %2641 = vmatpush.msra.mxu0 %v2640
  %v2642 = vand.u32 %v548, 4294901760
  %2643 = vmatpush.msra.mxu0 %v2642
  %v2644 = vand.u32 %v545, 4294901760
  %2645 = vmatpush.msra.mxu0 %v2644
  %v2646 = vand.u32 %v602, 4294901760
  %2647 = vmatmul.f32.gmra.mxu0 %v2646
  %v2648 = vpop.f32.mrf.mxu0
  %v2649 = vadd.f32 %v2612, %v2648
  %2650 = vdwg.mxu0
  %2651 = vst [vmem:[%s7] sm:$0x77] %v491
  %2652 = vst [vmem:[%s7 + $0x8] sm:$0x77] %v494
  %v2655 = vrot.slane %v1967, 4
  %v2656 = vsel %vm427, %v1285, %v2655
  %2658 = vst [vmem:[%s7 + $0x10] sm:$0x77] %v2656
  %2659 = vst [vmem:[%s7 + $0x18] sm:$0x7] %v2649
  // Predicated region
  $region30: #{model_forward.1} parent=0 // pred_check
    _
  $region31: #{model_forward.1} parent=0 // pred_check_branch
    %2661 = sbr.rel (0) target = $region33
  $region32: #{model_forward.1} parent=0 // pred_region
    _
  $region33: #{model_forward.1} parent=0 // pred_fallthru
    _
  // Predicated region
  $region34: #{model_forward.1} parent=0 // pred_check
    _
  $region35: #{model_forward.1} parent=0 // pred_check_branch
    %2663 = sbr.rel (0) target = $region37
  $region36: #{model_forward.1} parent=0 // pred_region
    _
  $region37: #{model_forward.1} parent=0 // pred_fallthru
    _

</llo_original>
